<compile_context>
chip_gen: v7x
topology: tpu7x:2x2x1
jax: 0.10.0
libtpu: 0.0.40
codegen_flags: <defaults>
</compile_context>

<pallas_src>
import functools

import jax
import jax.numpy as jnp
import numpy as np
from jax.experimental import pallas as pl
from jax.experimental.pallas import tpu as pltpu


# ----------------------------------------------------------------------------
# Pallas kernel
# ----------------------------------------------------------------------------

def _outconv1x1_kernel(w_ref, b_ref, x_ref, o_ref, *, cout):
    """One output tile of a 1x1x1 Conv3d.

    w_ref: (Cout_pad, Cin)   b_ref: (Cout_pad, 1)
    x_ref: (1, Cin, TN)      o_ref: (1, Cout, TN)
    """
    y = jnp.dot(w_ref[...], x_ref[0], preferred_element_type=jnp.float32)
    y = y + b_ref[...]
    # Only the real output channels are stored (lane-dense; sublane masking only).
    o_ref[0] = y[:cout].astype(o_ref.dtype)


# ----------------------------------------------------------------------------
# Wrapper
# ----------------------------------------------------------------------------

def _round_up(x, m):
    return ((x + m - 1) // m) * m


def _chip_tile_budget():
    """(per-input-buffer VMEM budget in bytes, #TensorCores per chip)."""
    budget = 4 * 1024 * 1024     # conservative default: fits v5e's 16 MiB scoped VMEM
    num_cores = 1
    try:
        kind = jax.devices()[0].device_kind.lower()
    except Exception:
        kind = ""
    if "v6" in kind:
        budget = 8 * 1024 * 1024     # 2x8 MiB double-buffered input << 32 MiB scoped
    elif "v7" in kind:
        budget = 8 * 1024 * 1024     # well inside 32 MiB scoped / 64 MiB physical
        num_cores = 2                # megacore: keep >= 2 parallel grid points
    return budget, num_cores


def out_conv3d_1x1(x, weight, bias):
    """nn.Conv3d(Cin, Cout, kernel_size=1) forward.

    x:      (N, Cin, D, H, W)  (PyTorch NCDHW)
    weight: (Cout, Cin, 1, 1, 1)
    bias:   (Cout,)
    returns (N, Cout, D, H, W)
    """
    N, Cin, D, H, W = x.shape
    Cout = weight.shape[0]
    dhw = D * H * W

    dtype = jnp.float32
    x2 = x.reshape(N, Cin, dhw)            # contiguous reshape: no HBM copy
    if x2.dtype != dtype:
        x2 = x2.astype(dtype)
    w2 = weight.reshape(Cout, Cin).astype(dtype)
    b2 = bias.reshape(Cout, 1).astype(dtype)

    # Pad only the matmul operands (W, b) up to the sublane granule (8): a few KiB.
    Cout_pad = _round_up(Cout, 8)
    if Cout_pad != Cout:
        w2 = jnp.pad(w2, ((0, Cout_pad - Cout), (0, 0)))
        b2 = jnp.pad(b2, ((0, Cout_pad - Cout), (0, 0)))

    budget, num_cores = _chip_tile_budget()
    # Spatial (lane) tile: multiple of 128, as large as the VMEM budget allows.
    tn_cap = max(128, (budget // (Cin * 4)) // 128 * 128)
    TN = min(tn_cap, _round_up(dhw, 128))
    if num_cores >= 2 and N == 1 and dhw > 128:
        # v7x only: ensure >= 2 independent grid points for the two TensorCores.
        TN = min(TN, max(128, _round_up((dhw + 1) // 2, 128)))

    grid = (N, pl.cdiv(dhw, TN))   # ragged final block handled by Pallas

    out = pl.pallas_call(
        functools.partial(_outconv1x1_kernel, cout=Cout),
        out_shape=jax.ShapeDtypeStruct((N, Cout, dhw), dtype),
        grid_spec=pltpu.PrefetchScalarGridSpec(
            num_scalar_prefetch=0,
            grid=grid,
            in_specs=[
                pl.BlockSpec((Cout_pad, Cin), lambda n, t: (0, 0)),  # weight (resident)
                pl.BlockSpec((Cout_pad, 1), lambda n, t: (0, 0)),    # bias   (resident)
                pl.BlockSpec((1, Cin, TN), lambda n, t: (n, 0, t)),  # activations
            ],
            out_specs=pl.BlockSpec((1, Cout, TN), lambda n, t: (n, 0, t)),
        ),
        compiler_params=pltpu.CompilerParams(
            dimension_semantics=("parallel", "parallel"),
        ),
    )(w2, b2, x2)

    return out.reshape(N, Cout, D, H, W)


# ----------------------------------------------------------------------------

if __name__ == "__main__":
    key = jax.random.PRNGKey(0)
    k_w, k_b, k_x = jax.random.split(key, 3)

    in_channels, out_channels = 64, 2
    batch, spatial = 2, 16

    # PyTorch Conv3d(k=1) default init: uniform(-1/sqrt(fan_in), 1/sqrt(fan_in)).
    bound = 1.0 / np.sqrt(in_channels)
    weight = jax.random.uniform(
        k_w, (out_channels, in_channels, 1, 1, 1), jnp.float32, -bound, bound)
    bias = jax.random.uniform(k_b, (out_channels,), jnp.float32, -bound, bound)
    x = jax.random.normal(
        k_x, (batch, in_channels, spatial, spatial, spatial), jnp.float32)

    out = out_conv3d_1x1(x, weight, bias)
    out = jax.block_until_ready(out)

    assert out.shape == (batch, out_channels, spatial, spatial, spatial), out.shape
    assert bool(jnp.all(jnp.isfinite(out)))

    # Reference check against plain-JAX math (same semantics as nn.Conv3d(k=1)).
    ref = jnp.einsum("oc,ncdhw->nodhw",
                     weight.reshape(out_channels, in_channels), x)
    ref = ref + bias.reshape(1, out_channels, 1, 1, 1)
    assert jnp.allclose(out, ref, rtol=1e-4, atol=1e-4), \
        float(jnp.max(jnp.abs(out - ref)))

    print("KERNEL_OK")
</pallas_src>

<mosaic_0001>
module attributes {stable_mosaic.version = 11 : i64} {
  func.func @_outconv1x1_kernel(%arg0: i32, %arg1: i32, %arg2: memref<8x64xf32, #tpu.memory_space<vmem>>, %arg3: memref<8x1xf32, #tpu.memory_space<vmem>>, %arg4: memref<1x64x4096xf32, #tpu.memory_space<vmem>>, %arg5: memref<1x2x4096xf32, #tpu.memory_space<vmem>>) attributes {dimension_semantics = [#tpu.dimension_semantics<parallel>, #tpu.dimension_semantics<parallel>], iteration_bounds = array<i64: 2, 1>, scalar_prefetch = 0 : i64, scratch_operands = 0 : i64, tpu.core_type = #tpu.core_type<tc>, window_params = [{pipeline_mode = #tpu.pipeline_mode<synchronous>, transform_indices = @transform_0, window_bounds = array<i64: 8, 64>}, {pipeline_mode = #tpu.pipeline_mode<synchronous>, transform_indices = @transform_1, window_bounds = array<i64: 8, 1>}, {transform_indices = @transform_2, window_bounds = array<i64: 1, 64, 4096>}, {transform_indices = @transform_3, window_bounds = array<i64: 1, 2, 4096>}]} {
    %c0 = arith.constant 0 : index
    %c0_0 = arith.constant 0 : index
    %0 = vector.load %arg2[%c0, %c0_0] : memref<8x64xf32, #tpu.memory_space<vmem>>, vector<8x64xf32>
    %c0_1 = arith.constant 0 : index
    %c0_2 = arith.constant 0 : index
    %c0_3 = arith.constant 0 : index
    %1 = vector.load %arg4[%c0_1, %c0_2, %c0_3] : memref<1x64x4096xf32, #tpu.memory_space<vmem>>, vector<1x64x4096xf32>
    %2 = vector.shape_cast %1 : vector<1x64x4096xf32> to vector<64x4096xf32>
    %cst = arith.constant dense<0.000000e+00> : vector<8x4096xf32>
    %3 = tpu.matmul %0, %2, %cst {dimension_numbers = #tpu.dot_dimension_numbers<[1], [0], [0], [1], [0, 0, 1, 1], [], []>} : vector<8x64xf32>, vector<64x4096xf32>, vector<8x4096xf32> -> vector<8x4096xf32>
    %c0_4 = arith.constant 0 : index
    %c0_5 = arith.constant 0 : index
    %4 = vector.load %arg3[%c0_4, %c0_5] : memref<8x1xf32, #tpu.memory_space<vmem>>, vector<8x1xf32>
    %5 = vector.broadcast %4 : vector<8x1xf32> to vector<8x4096xf32>
    %6 = arith.addf %3, %5 : vector<8x4096xf32>
    %7 = vector.extract_strided_slice %6 {offsets = [0, 0], sizes = [2, 4096], strides = [1, 1]} : vector<8x4096xf32> to vector<2x4096xf32>
    %c0_6 = arith.constant 0 : index
    %c0_7 = arith.constant 0 : index
    %c0_8 = arith.constant 0 : index
    %8 = vector.load %arg5[%c0_6, %c0_7, %c0_8] : memref<1x2x4096xf32, #tpu.memory_space<vmem>>, vector<1x2x4096xf32>
    %9 = vector.shape_cast %8 : vector<1x2x4096xf32> to vector<2x4096xf32>
    %10 = vector.shape_cast %7 : vector<2x4096xf32> to vector<1x2x4096xf32>
    tpu.vector_store %arg5[%c0_6, %c0_7, %c0_8], %10 {strides = array<i32>} : memref<1x2x4096xf32, #tpu.memory_space<vmem>>, vector<1x2x4096xf32>,
    return
  }
  func.func @transform_0(%arg0: i32, %arg1: i32) -> (i32, i32) {
    %c0_i32 = arith.constant 0 : i32
    %c0_i32_0 = arith.constant 0 : i32
    %c0_i32_1 = arith.constant 0 : i32
    return %c0_i32, %c0_i32_0 : i32, i32
  }
  func.func @transform_1(%arg0: i32, %arg1: i32) -> (i32, i32) {
    %c0_i32 = arith.constant 0 : i32
    %c0_i32_0 = arith.constant 0 : i32
    %c0_i32_1 = arith.constant 0 : i32
    return %c0_i32, %c0_i32_0 : i32, i32
  }
  func.func @transform_2(%arg0: i32, %arg1: i32) -> (i32, i32, i32) {
    %c0_i32 = arith.constant 0 : i32
    %c0_i32_0 = arith.constant 0 : i32
    return %arg0, %c0_i32, %arg1 : i32, i32, i32
  }
  func.func @transform_3(%arg0: i32, %arg1: i32) -> (i32, i32, i32) {
    %c0_i32 = arith.constant 0 : i32
    %c0_i32_0 = arith.constant 0 : i32
    return %arg0, %c0_i32, %arg1 : i32, i32, i32
  }
}

</mosaic_0001>

<llo_original>
// kernel: tpu_custom_call.1
$region0: #{tpu_custom_call.1}
  #allocation0 [shape = 'u32[]', space=smem, size = 0x4, offset = 0x4, fixed_abs, tag = 'smem constant byte address 0x4 - core index']
  #allocation1 [shape = 'u32[144,128]{1,0:T(1,128)}', space=vmem, size = 0x12000, scoped, tag = 'internal scratch']
  %s0 = inlined_call_operand.hbm [shape: f32[8,64], index: 0, kind: input, shape index: {}]
  %s1 = inlined_call_operand.vmem [shape: f32[8,1], index: 1, kind: input, shape index: {}]
  %s2 = inlined_call_operand.hbm [shape: f32[2,64,4096], index: 2, kind: input, shape index: {}]
  %s3 = inlined_call_operand.hbm [shape: f32[2,2,4096], index: 3, kind: output, shape index: {}]
  %s4 = sld [smem:[#allocation0]]
  $region53: #{tpu_custom_call.1} parent=0
    _
  %s6 = ssub.s32 1, %s4
  %s7 = scalar_select 0, %s6, %s4
  $region1: #{tpu_custom_call.1} parent=0
    #allocation2 [shape = 'u8[4096]{0}', space=vmem, size = 0x1000, scoped, tag = 'input window, operand 0, single buffered']
    #allocation3 [shape = 's32[2]{0}', space=sflag, size = 0x8, scoped, tag = 'scoped memory for tpu_custom_call.1']
    #allocation4 [shape = 's32[2]{0}', space=sflag, size = 0x8, scoped, tag = 'scoped memory for tpu_custom_call.1']
    #allocation5 [shape = 'u8[2097152]{0}', space=vmem, size = 0x200000, scoped, tag = 'input window, operand 2']
    #allocation6 [shape = 's32[2]{0}', space=sflag, size = 0x8, scoped, tag = 'scoped memory for tpu_custom_call.1']
    #allocation7 [shape = 'u8[65536]{0}', space=vmem, size = 0x10000, scoped, tag = 'output window, operand 0']
    %8 = vsyncpa [#allocation3], 0
    %9 = vsyncpa [#allocation6], 0
    %s10 = scalar_lea.sflag [#allocation6], 1
    %11 = vsyncpa %s10, 0
    %12 = vsyncpa [#allocation4], 0
    %s13 = scalar_lea.sflag [#allocation4], 1
    %14 = vsyncpa %s13, 0
    loop: start=0, step=1, limit=4
    $region2: #{tpu_custom_call.1} parent=1 // loop_pre_header
      _
    $region3: #{tpu_custom_call.1} parent=1 // loop_header
      %s16 = sphi 0, %s20
      %p17 = scmp.ge.s32.totalorder %s16, 4
      %s23 = sphi 0, %s35
      %s24 = sphi 0, %s31
      %s25 = sphi 0, %s23
      %s26 = sphi 0, %s24
      %s27 = sphi 0, %s25
      %s28 = sphi 0, %s26
      %s36 = sphi 0, %s36
      %s38 = sphi 0, %s36
      %s39 = sphi 0, %s38
      %s53 = sphi 0, %s39
      %s57 = sphi 0, %s57
      %s59 = sphi 0, %s57
      %s60 = sphi 0, %s59
      %s74 = sphi 0, %s60
      %s82 = sphi 0, %s84
      %s85 = sphi 0, %s82
      %s86 = sphi 0, %s85
      %s102 = sphi 0, %s86
      %s110 = sphi 0, %s112
      %s113 = sphi 0, %s110
      %s114 = sphi 0, %s113
      %s130 = sphi 0, %s114
    $region4: #{tpu_custom_call.1} parent=1 // loop_header_branch
      %19 = sbr.rel (%p17) target = $region8
    $region5: #{tpu_custom_call.1} parent=1 // loop_body
      %s21 = ssub.s32 %s16, 1
      %s22 = ssub.s32 %s16, 2
      %s29 = sadd.s32 1, %s24
      %p30 = scmp.ge.s32.totalorder %s29, 1
      %s31 = scalar_select %p30, 0, %s29
      %s32 = sadd.s32 1, %s23
      %s33 = scalar_select %p30, %s32, %s23
      %p34 = scmp.ge.s32.totalorder %s33, 2
      %s35 = scalar_select %p34, 0, %s33
      %s37 = sadd.s32 %s36, 1
      %p40 = scmp.eq.s32.totalorder %s16, 1
      %p41 = scmp.ne.s32.totalorder %s36, %s38
      %p42 = scmp.eq.s32.totalorder %s16, 0
      %p43 = por %p41, %p42
      %p44 = scmp.ne.s32.totalorder %s36, %s38
      %p45 = scmp.eq.s32.totalorder %s21, 1
      %p46 = por %p44, %p45
      %p47 = scmp.ne.s32.totalorder %s38, %s39
      %p48 = scmp.eq.s32.totalorder %s21, 0
      %p49 = por %p47, %p48
      %p50 = scmp.ne.s32.totalorder %s38, %s39
      %p51 = scmp.eq.s32.totalorder %s22, 1
      %p52 = por %p50, %p51
      %p54 = scmp.ne.s32.totalorder %s39, %s53
      %p55 = scmp.eq.s32.totalorder %s22, 0
      %p56 = por %p54, %p55
      %s58 = sadd.s32 %s57, 1
      %p61 = scmp.eq.s32.totalorder %s16, 1
      %p62 = scmp.ne.s32.totalorder %s57, %s59
      %p63 = scmp.eq.s32.totalorder %s16, 0
      %p64 = por %p62, %p63
      %p65 = scmp.ne.s32.totalorder %s57, %s59
      %p66 = scmp.eq.s32.totalorder %s21, 1
      %p67 = por %p65, %p66
      %p68 = scmp.ne.s32.totalorder %s59, %s60
      %p69 = scmp.eq.s32.totalorder %s21, 0
      %p70 = por %p68, %p69
      %p71 = scmp.ne.s32.totalorder %s59, %s60
      %p72 = scmp.eq.s32.totalorder %s22, 1
      %p73 = por %p71, %p72
      %p75 = scmp.ne.s32.totalorder %s60, %s74
      %p76 = scmp.eq.s32.totalorder %s22, 0
      %p77 = por %p75, %p76
      %s78 = ssub.s32 %s23, %s35
      %s79 = ssub.s32 %s24, %s31
      %s80 = sor.u32 %s78, %s79
      %p81 = scmp.eq.s32.totalorder %s80, 0
      %s83 = sadd.s32 %s82, 1
      %s84 = scalar_select %p81, %s82, %s83
      %p87 = pneg %p81
      %p88 = scmp.eq.s32.totalorder %s16, 1
      %p89 = por %p87, %p88
      %p90 = scmp.ne.s32.totalorder %s82, %s85
      %p91 = scmp.eq.s32.totalorder %s16, 0
      %p92 = por %p90, %p91
      %p93 = scmp.ne.s32.totalorder %s82, %s85
      %p94 = scmp.eq.s32.totalorder %s21, 1
      %p95 = por %p93, %p94
      %p96 = scmp.ne.s32.totalorder %s85, %s86
      %p97 = scmp.eq.s32.totalorder %s21, 0
      %p98 = por %p96, %p97
      %p99 = scmp.ne.s32.totalorder %s85, %s86
      %p100 = scmp.eq.s32.totalorder %s22, 1
      %p101 = por %p99, %p100
      %p103 = scmp.ne.s32.totalorder %s86, %s102
      %p104 = scmp.eq.s32.totalorder %s22, 0
      %p105 = por %p103, %p104
      %s106 = ssub.s32 %s23, %s35
      %s107 = ssub.s32 %s24, %s31
      %s108 = sor.u32 %s106, %s107
      %p109 = scmp.eq.s32.totalorder %s108, 0
      %s111 = sadd.s32 %s110, 1
      %s112 = scalar_select %p109, %s110, %s111
      %p115 = pneg %p109
      %p116 = scmp.eq.s32.totalorder %s16, 1
      %p117 = por %p115, %p116
      %p118 = scmp.ne.s32.totalorder %s110, %s113
      %p119 = scmp.eq.s32.totalorder %s16, 0
      %p120 = por %p118, %p119
      %p121 = scmp.ne.s32.totalorder %s110, %s113
      %p122 = scmp.eq.s32.totalorder %s21, 1
      %p123 = por %p121, %p122
      %p124 = scmp.ne.s32.totalorder %s113, %s114
      %p125 = scmp.eq.s32.totalorder %s21, 0
      %p126 = por %p124, %p125
      %p127 = scmp.ne.s32.totalorder %s113, %s114
      %p128 = scmp.eq.s32.totalorder %s22, 1
      %p129 = por %p127, %p128
      %p131 = scmp.ne.s32.totalorder %s114, %s130
      %p132 = scmp.eq.s32.totalorder %s22, 0
      %p133 = por %p131, %p132
      %p134 = scmp.le.s32.totalorder 1, %s16
      %p135 = scmp.lt.s32.totalorder %s16, 3
      %p136 = pnand %p134, %p135
      %p137 = pneg %p136
      // Predicated region
      $region9: #{tpu_custom_call.1} parent=5 // pred_check
        _
      $region10: #{tpu_custom_call.1} parent=5 // pred_check_branch
        %139 = sbr.rel (%p136) target = $region12
      $region11: #{tpu_custom_call.1} parent=5 // pred_region
        %s140 = ssub.s32 %s16, 1
        // Predicated region
        $region13: #{tpu_custom_call.1} parent=11 // pred_check
          %p141 = pneg %p49
        $region14: #{tpu_custom_call.1} parent=11 // pred_check_branch
          %143 = sbr.rel (%p141) target = $region16
        $region15: #{tpu_custom_call.1} parent=11 // pred_region
          %s145 = ssub.s32 128, 128
          %146 = vsyncadd [#allocation3], %s145
          %s148 = sshll.u32 [#allocation2], 4
          %s149 = int_to_ptr.vmem [resolvable:$true] %s148
          %151 = dma.hbm_to_vmem [thread:$0]  %s0, 128, %s149, [#allocation3]
        $region16: #{tpu_custom_call.1} parent=11 // pred_fallthru
          _
        // Predicated region
        $region17: #{tpu_custom_call.1} parent=11 // pred_check
          %p152 = pneg %p70
        $region18: #{tpu_custom_call.1} parent=11 // pred_check_branch
          %154 = sbr.rel (%p152) target = $region20
        $region19: #{tpu_custom_call.1} parent=11 // pred_region
          _
        $region20: #{tpu_custom_call.1} parent=11 // pred_fallthru
          _
      $region12: #{tpu_custom_call.1} parent=5 // pred_fallthru
        _
      %p155 = scmp.lt.s32.totalorder %s16, 2
      // Predicated region
      $region21: #{tpu_custom_call.1} parent=5 // pred_check
        %p156 = pneg %p155
      $region22: #{tpu_custom_call.1} parent=5 // pred_check_branch
        %158 = sbr.rel (%p156) target = $region24
      $region23: #{tpu_custom_call.1} parent=5 // pred_region
        // Predicated region
        $region25: #{tpu_custom_call.1} parent=23 // pred_check
          %p159 = pneg %p92
        $region26: #{tpu_custom_call.1} parent=23 // pred_check_branch
          %161 = sbr.rel (%p159) target = $region28
        $region27: #{tpu_custom_call.1} parent=23 // pred_region
          %s162 = sand.u32 %s82, 1
          %s163 = scalar_lea.sflag [#allocation6], %s162
          %s164 = sand.u32 %s82, 1
          %s165 = smul.addr %s164, 2048
          %s166 = scalar_lea.vmem [#allocation5], %s165
          %s167 = smul.u32 32, %s24
          %s169 = ssub.s32 32768, 32768
          %170 = vsyncadd %s163, %s169
          %s171 = smul.addr %s23, 256
          %s172 = sadd.s32 %s167, %s171
          %s173 = smul.addr %s172, 128
          %s174 = scalar_lea.hbm %s2, %s173
          %s175 = sshll.u32 %s166, 4
          %s176 = int_to_ptr.vmem [resolvable:$true] %s175
          %181 = dma.hbm_to_vmem [thread:$0]  %s174, 32768, %s176, %s163, 4096, 4096, 256
        $region28: #{tpu_custom_call.1} parent=23 // pred_fallthru
          _
      $region24: #{tpu_custom_call.1} parent=5 // pred_fallthru
        _
      %p182 = scmp.le.s32.totalorder 1, %s16
      %p183 = scmp.lt.s32.totalorder %s16, 3
      %p184 = pnand %p182, %p183
      %p185 = pneg %p184
      // Predicated region
      $region29: #{tpu_custom_call.1} parent=5 // pred_check
        _
      $region30: #{tpu_custom_call.1} parent=5 // pred_check_branch
        %187 = sbr.rel (%p184) target = $region32
      $region31: #{tpu_custom_call.1} parent=5 // pred_region
        %s188 = ssub.s32 %s16, 1
        // Predicated region
        $region33: #{tpu_custom_call.1} parent=31 // pred_check
          %p189 = pneg %p49
        $region34: #{tpu_custom_call.1} parent=31 // pred_check_branch
          %191 = sbr.rel (%p189) target = $region36
        $region35: #{tpu_custom_call.1} parent=31 // pred_region
          %192 = dma.done [#allocation3], 128
        $region36: #{tpu_custom_call.1} parent=31 // pred_fallthru
          _
        %s193 = sand.u32 %s85, 1
        %s194 = scalar_lea.sflag [#allocation6], %s193
        %s195 = sand.u32 %s85, 1
        %s196 = smul.addr %s195, 2048
        %s197 = scalar_lea.vmem [#allocation5], %s196
        // Predicated region
        $region37: #{tpu_custom_call.1} parent=31 // pred_check
          %p198 = pneg %p98
        $region38: #{tpu_custom_call.1} parent=31 // pred_check_branch
          %200 = sbr.rel (%p198) target = $region40
        $region39: #{tpu_custom_call.1} parent=31 // pred_region
          %201 = dma.done %s194, 32768
        $region40: #{tpu_custom_call.1} parent=31 // pred_fallthru
          _
        %p202 = pneg %p49
        %p203 = pneg %p46
        %p204 = pneg %p70
        %p205 = pneg %p67
        %s206 = sand.u32 %s85, 1
        %s207 = scalar_lea.sflag [#allocation6], %s206
        %s208 = sand.u32 %s85, 1
        %s209 = smul.addr %s208, 2048
        %s210 = scalar_lea.vmem [#allocation5], %s209
        %p211 = pneg %p98
        %p212 = pneg %p95
        %p213 = pneg %p126
        %p214 = pneg %p123
        %s215 = sand.u32 %s113, 1
        %s216 = scalar_lea.sflag [#allocation4], %s215
        %s217 = sand.u32 %s113, 1
        %s218 = smul.addr %s217, 64
        %s219 = scalar_lea.vmem [#allocation7], %s218
        %s220 = smul.u32 32, %s26
        %s221 = smul.u32 32, %s26
        %v222 = vld [vmem:[#allocation2] sm:$0xff]
        %v223 = vld [vmem:[%s197] sm:$0xff]
        %v224 = vld [vmem:[%s197 + $0x8] sm:$0xff]
        %v225 = vld [vmem:[%s197 + $0x10] sm:$0xff]
        %v226 = vld [vmem:[%s197 + $0x18] sm:$0xff]
        %v227 = vld [vmem:[%s197 + $0x20] sm:$0xff]
        %v228 = vld [vmem:[%s197 + $0x28] sm:$0xff]
        %v229 = vld [vmem:[%s197 + $0x30] sm:$0xff]
        %v230 = vld [vmem:[%s197 + $0x38] sm:$0xff]
        %v231 = vld [vmem:[%s197 + $0x40] sm:$0xff]
        %v232 = vld [vmem:[%s197 + $0x48] sm:$0xff]
        %v233 = vld [vmem:[%s197 + $0x50] sm:$0xff]
        %v234 = vld [vmem:[%s197 + $0x58] sm:$0xff]
        %v235 = vld [vmem:[%s197 + $0x60] sm:$0xff]
        %v236 = vld [vmem:[%s197 + $0x68] sm:$0xff]
        %v237 = vld [vmem:[%s197 + $0x70] sm:$0xff]
        %v238 = vld [vmem:[%s197 + $0x78] sm:$0xff]
        %v239 = vld [vmem:[%s197 + $0x80] sm:$0xff]
        %v240 = vld [vmem:[%s197 + $0x88] sm:$0xff]
        %v241 = vld [vmem:[%s197 + $0x90] sm:$0xff]
        %v242 = vld [vmem:[%s197 + $0x98] sm:$0xff]
        %v243 = vld [vmem:[%s197 + $0xa0] sm:$0xff]
        %v244 = vld [vmem:[%s197 + $0xa8] sm:$0xff]
        %v245 = vld [vmem:[%s197 + $0xb0] sm:$0xff]
        %v246 = vld [vmem:[%s197 + $0xb8] sm:$0xff]
        %v247 = vld [vmem:[%s197 + $0xc0] sm:$0xff]
        %v248 = vld [vmem:[%s197 + $0xc8] sm:$0xff]
        %v249 = vld [vmem:[%s197 + $0xd0] sm:$0xff]
        %v250 = vld [vmem:[%s197 + $0xd8] sm:$0xff]
        %v251 = vld [vmem:[%s197 + $0xe0] sm:$0xff]
        %v252 = vld [vmem:[%s197 + $0xe8] sm:$0xff]
        %v253 = vld [vmem:[%s197 + $0xf0] sm:$0xff]
        %v254 = vld [vmem:[%s197 + $0xf8] sm:$0xff]
        %v255 = vld [vmem:[%s197 + $0x100] sm:$0xff]
        %v256 = vld [vmem:[%s197 + $0x108] sm:$0xff]
        %v257 = vld [vmem:[%s197 + $0x110] sm:$0xff]
        %v258 = vld [vmem:[%s197 + $0x118] sm:$0xff]
        %v259 = vld [vmem:[%s197 + $0x120] sm:$0xff]
        %v260 = vld [vmem:[%s197 + $0x128] sm:$0xff]
        %v261 = vld [vmem:[%s197 + $0x130] sm:$0xff]
        %v262 = vld [vmem:[%s197 + $0x138] sm:$0xff]
        %v263 = vld [vmem:[%s197 + $0x140] sm:$0xff]
        %v264 = vld [vmem:[%s197 + $0x148] sm:$0xff]
        %v265 = vld [vmem:[%s197 + $0x150] sm:$0xff]
        %v266 = vld [vmem:[%s197 + $0x158] sm:$0xff]
        %v267 = vld [vmem:[%s197 + $0x160] sm:$0xff]
        %v268 = vld [vmem:[%s197 + $0x168] sm:$0xff]
        %v269 = vld [vmem:[%s197 + $0x170] sm:$0xff]
        %v270 = vld [vmem:[%s197 + $0x178] sm:$0xff]
        %v271 = vld [vmem:[%s197 + $0x180] sm:$0xff]
        %v272 = vld [vmem:[%s197 + $0x188] sm:$0xff]
        %v273 = vld [vmem:[%s197 + $0x190] sm:$0xff]
        %v274 = vld [vmem:[%s197 + $0x198] sm:$0xff]
        %v275 = vld [vmem:[%s197 + $0x1a0] sm:$0xff]
        %v276 = vld [vmem:[%s197 + $0x1a8] sm:$0xff]
        %v277 = vld [vmem:[%s197 + $0x1b0] sm:$0xff]
        %v278 = vld [vmem:[%s197 + $0x1b8] sm:$0xff]
        %v279 = vld [vmem:[%s197 + $0x1c0] sm:$0xff]
        %v280 = vld [vmem:[%s197 + $0x1c8] sm:$0xff]
        %v281 = vld [vmem:[%s197 + $0x1d0] sm:$0xff]
        %v282 = vld [vmem:[%s197 + $0x1d8] sm:$0xff]
        %v283 = vld [vmem:[%s197 + $0x1e0] sm:$0xff]
        %v284 = vld [vmem:[%s197 + $0x1e8] sm:$0xff]
        %v285 = vld [vmem:[%s197 + $0x1f0] sm:$0xff]
        %v286 = vld [vmem:[%s197 + $0x1f8] sm:$0xff]
        %v287 = vld [vmem:[%s197 + $0x200] sm:$0xff]
        %v288 = vld [vmem:[%s197 + $0x208] sm:$0xff]
        %v289 = vld [vmem:[%s197 + $0x210] sm:$0xff]
        %v290 = vld [vmem:[%s197 + $0x218] sm:$0xff]
        %v291 = vld [vmem:[%s197 + $0x220] sm:$0xff]
        %v292 = vld [vmem:[%s197 + $0x228] sm:$0xff]
        %v293 = vld [vmem:[%s197 + $0x230] sm:$0xff]
        %v294 = vld [vmem:[%s197 + $0x238] sm:$0xff]
        %v295 = vld [vmem:[%s197 + $0x240] sm:$0xff]
        %v296 = vld [vmem:[%s197 + $0x248] sm:$0xff]
        %v297 = vld [vmem:[%s197 + $0x250] sm:$0xff]
        %v298 = vld [vmem:[%s197 + $0x258] sm:$0xff]
        %v299 = vld [vmem:[%s197 + $0x260] sm:$0xff]
        %v300 = vld [vmem:[%s197 + $0x268] sm:$0xff]
        %v301 = vld [vmem:[%s197 + $0x270] sm:$0xff]
        %v302 = vld [vmem:[%s197 + $0x278] sm:$0xff]
        %v303 = vld [vmem:[%s197 + $0x280] sm:$0xff]
        %v304 = vld [vmem:[%s197 + $0x288] sm:$0xff]
        %v305 = vld [vmem:[%s197 + $0x290] sm:$0xff]
        %v306 = vld [vmem:[%s197 + $0x298] sm:$0xff]
        %v307 = vld [vmem:[%s197 + $0x2a0] sm:$0xff]
        %v308 = vld [vmem:[%s197 + $0x2a8] sm:$0xff]
        %v309 = vld [vmem:[%s197 + $0x2b0] sm:$0xff]
        %v310 = vld [vmem:[%s197 + $0x2b8] sm:$0xff]
        %v311 = vld [vmem:[%s197 + $0x2c0] sm:$0xff]
        %v312 = vld [vmem:[%s197 + $0x2c8] sm:$0xff]
        %v313 = vld [vmem:[%s197 + $0x2d0] sm:$0xff]
        %v314 = vld [vmem:[%s197 + $0x2d8] sm:$0xff]
        %v315 = vld [vmem:[%s197 + $0x2e0] sm:$0xff]
        %v316 = vld [vmem:[%s197 + $0x2e8] sm:$0xff]
        %v317 = vld [vmem:[%s197 + $0x2f0] sm:$0xff]
        %v318 = vld [vmem:[%s197 + $0x2f8] sm:$0xff]
        %v319 = vld [vmem:[%s197 + $0x300] sm:$0xff]
        %v320 = vld [vmem:[%s197 + $0x308] sm:$0xff]
        %v321 = vld [vmem:[%s197 + $0x310] sm:$0xff]
        %v322 = vld [vmem:[%s197 + $0x318] sm:$0xff]
        %v323 = vld [vmem:[%s197 + $0x320] sm:$0xff]
        %v324 = vld [vmem:[%s197 + $0x328] sm:$0xff]
        %v325 = vld [vmem:[%s197 + $0x330] sm:$0xff]
        %v326 = vld [vmem:[%s197 + $0x338] sm:$0xff]
        %v327 = vld [vmem:[%s197 + $0x340] sm:$0xff]
        %v328 = vld [vmem:[%s197 + $0x348] sm:$0xff]
        %v329 = vld [vmem:[%s197 + $0x350] sm:$0xff]
        %v330 = vld [vmem:[%s197 + $0x358] sm:$0xff]
        %v331 = vld [vmem:[%s197 + $0x360] sm:$0xff]
        %v332 = vld [vmem:[%s197 + $0x368] sm:$0xff]
        %v333 = vld [vmem:[%s197 + $0x370] sm:$0xff]
        %v334 = vld [vmem:[%s197 + $0x378] sm:$0xff]
        %v335 = vld [vmem:[%s197 + $0x380] sm:$0xff]
        %v336 = vld [vmem:[%s197 + $0x388] sm:$0xff]
        %v337 = vld [vmem:[%s197 + $0x390] sm:$0xff]
        %v338 = vld [vmem:[%s197 + $0x398] sm:$0xff]
        %v339 = vld [vmem:[%s197 + $0x3a0] sm:$0xff]
        %v340 = vld [vmem:[%s197 + $0x3a8] sm:$0xff]
        %v341 = vld [vmem:[%s197 + $0x3b0] sm:$0xff]
        %v342 = vld [vmem:[%s197 + $0x3b8] sm:$0xff]
        %v343 = vld [vmem:[%s197 + $0x3c0] sm:$0xff]
        %v344 = vld [vmem:[%s197 + $0x3c8] sm:$0xff]
        %v345 = vld [vmem:[%s197 + $0x3d0] sm:$0xff]
        %v346 = vld [vmem:[%s197 + $0x3d8] sm:$0xff]
        %v347 = vld [vmem:[%s197 + $0x3e0] sm:$0xff]
        %v348 = vld [vmem:[%s197 + $0x3e8] sm:$0xff]
        %v349 = vld [vmem:[%s197 + $0x3f0] sm:$0xff]
        %v350 = vld [vmem:[%s197 + $0x3f8] sm:$0xff]
        %v351 = vld [vmem:[%s197 + $0x400] sm:$0xff]
        %v352 = vld [vmem:[%s197 + $0x408] sm:$0xff]
        %v353 = vld [vmem:[%s197 + $0x410] sm:$0xff]
        %v354 = vld [vmem:[%s197 + $0x418] sm:$0xff]
        %v355 = vld [vmem:[%s197 + $0x420] sm:$0xff]
        %v356 = vld [vmem:[%s197 + $0x428] sm:$0xff]
        %v357 = vld [vmem:[%s197 + $0x430] sm:$0xff]
        %v358 = vld [vmem:[%s197 + $0x438] sm:$0xff]
        %v359 = vld [vmem:[%s197 + $0x440] sm:$0xff]
        %v360 = vld [vmem:[%s197 + $0x448] sm:$0xff]
        %v361 = vld [vmem:[%s197 + $0x450] sm:$0xff]
        %v362 = vld [vmem:[%s197 + $0x458] sm:$0xff]
        %v363 = vld [vmem:[%s197 + $0x460] sm:$0xff]
        %v364 = vld [vmem:[%s197 + $0x468] sm:$0xff]
        %v365 = vld [vmem:[%s197 + $0x470] sm:$0xff]
        %v366 = vld [vmem:[%s197 + $0x478] sm:$0xff]
        %v367 = vld [vmem:[%s197 + $0x480] sm:$0xff]
        %v368 = vld [vmem:[%s197 + $0x488] sm:$0xff]
        %v369 = vld [vmem:[%s197 + $0x490] sm:$0xff]
        %v370 = vld [vmem:[%s197 + $0x498] sm:$0xff]
        %v371 = vld [vmem:[%s197 + $0x4a0] sm:$0xff]
        %v372 = vld [vmem:[%s197 + $0x4a8] sm:$0xff]
        %v373 = vld [vmem:[%s197 + $0x4b0] sm:$0xff]
        %v374 = vld [vmem:[%s197 + $0x4b8] sm:$0xff]
        %v375 = vld [vmem:[%s197 + $0x4c0] sm:$0xff]
        %v376 = vld [vmem:[%s197 + $0x4c8] sm:$0xff]
        %v377 = vld [vmem:[%s197 + $0x4d0] sm:$0xff]
        %v378 = vld [vmem:[%s197 + $0x4d8] sm:$0xff]
        %v379 = vld [vmem:[%s197 + $0x4e0] sm:$0xff]
        %v380 = vld [vmem:[%s197 + $0x4e8] sm:$0xff]
        %v381 = vld [vmem:[%s197 + $0x4f0] sm:$0xff]
        %v382 = vld [vmem:[%s197 + $0x4f8] sm:$0xff]
        %v383 = vld [vmem:[%s197 + $0x500] sm:$0xff]
        %v384 = vld [vmem:[%s197 + $0x508] sm:$0xff]
        %v385 = vld [vmem:[%s197 + $0x510] sm:$0xff]
        %v386 = vld [vmem:[%s197 + $0x518] sm:$0xff]
        %v387 = vld [vmem:[%s197 + $0x520] sm:$0xff]
        %v388 = vld [vmem:[%s197 + $0x528] sm:$0xff]
        %v389 = vld [vmem:[%s197 + $0x530] sm:$0xff]
        %v390 = vld [vmem:[%s197 + $0x538] sm:$0xff]
        %v391 = vld [vmem:[%s197 + $0x540] sm:$0xff]
        %v392 = vld [vmem:[%s197 + $0x548] sm:$0xff]
        %v393 = vld [vmem:[%s197 + $0x550] sm:$0xff]
        %v394 = vld [vmem:[%s197 + $0x558] sm:$0xff]
        %v395 = vld [vmem:[%s197 + $0x560] sm:$0xff]
        %v396 = vld [vmem:[%s197 + $0x568] sm:$0xff]
        %v397 = vld [vmem:[%s197 + $0x570] sm:$0xff]
        %v398 = vld [vmem:[%s197 + $0x578] sm:$0xff]
        %v399 = vld [vmem:[%s197 + $0x580] sm:$0xff]
        %v400 = vld [vmem:[%s197 + $0x588] sm:$0xff]
        %v401 = vld [vmem:[%s197 + $0x590] sm:$0xff]
        %v402 = vld [vmem:[%s197 + $0x598] sm:$0xff]
        %v403 = vld [vmem:[%s197 + $0x5a0] sm:$0xff]
        %v404 = vld [vmem:[%s197 + $0x5a8] sm:$0xff]
        %v405 = vld [vmem:[%s197 + $0x5b0] sm:$0xff]
        %v406 = vld [vmem:[%s197 + $0x5b8] sm:$0xff]
        %v407 = vld [vmem:[%s197 + $0x5c0] sm:$0xff]
        %v408 = vld [vmem:[%s197 + $0x5c8] sm:$0xff]
        %v409 = vld [vmem:[%s197 + $0x5d0] sm:$0xff]
        %v410 = vld [vmem:[%s197 + $0x5d8] sm:$0xff]
        %v411 = vld [vmem:[%s197 + $0x5e0] sm:$0xff]
        %v412 = vld [vmem:[%s197 + $0x5e8] sm:$0xff]
        %v413 = vld [vmem:[%s197 + $0x5f0] sm:$0xff]
        %v414 = vld [vmem:[%s197 + $0x5f8] sm:$0xff]
        %v415 = vld [vmem:[%s197 + $0x600] sm:$0xff]
        %v416 = vld [vmem:[%s197 + $0x608] sm:$0xff]
        %v417 = vld [vmem:[%s197 + $0x610] sm:$0xff]
        %v418 = vld [vmem:[%s197 + $0x618] sm:$0xff]
        %v419 = vld [vmem:[%s197 + $0x620] sm:$0xff]
        %v420 = vld [vmem:[%s197 + $0x628] sm:$0xff]
        %v421 = vld [vmem:[%s197 + $0x630] sm:$0xff]
        %v422 = vld [vmem:[%s197 + $0x638] sm:$0xff]
        %v423 = vld [vmem:[%s197 + $0x640] sm:$0xff]
        %v424 = vld [vmem:[%s197 + $0x648] sm:$0xff]
        %v425 = vld [vmem:[%s197 + $0x650] sm:$0xff]
        %v426 = vld [vmem:[%s197 + $0x658] sm:$0xff]
        %v427 = vld [vmem:[%s197 + $0x660] sm:$0xff]
        %v428 = vld [vmem:[%s197 + $0x668] sm:$0xff]
        %v429 = vld [vmem:[%s197 + $0x670] sm:$0xff]
        %v430 = vld [vmem:[%s197 + $0x678] sm:$0xff]
        %v431 = vld [vmem:[%s197 + $0x680] sm:$0xff]
        %v432 = vld [vmem:[%s197 + $0x688] sm:$0xff]
        %v433 = vld [vmem:[%s197 + $0x690] sm:$0xff]
        %v434 = vld [vmem:[%s197 + $0x698] sm:$0xff]
        %v435 = vld [vmem:[%s197 + $0x6a0] sm:$0xff]
        %v436 = vld [vmem:[%s197 + $0x6a8] sm:$0xff]
        %v437 = vld [vmem:[%s197 + $0x6b0] sm:$0xff]
        %v438 = vld [vmem:[%s197 + $0x6b8] sm:$0xff]
        %v439 = vld [vmem:[%s197 + $0x6c0] sm:$0xff]
        %v440 = vld [vmem:[%s197 + $0x6c8] sm:$0xff]
        %v441 = vld [vmem:[%s197 + $0x6d0] sm:$0xff]
        %v442 = vld [vmem:[%s197 + $0x6d8] sm:$0xff]
        %v443 = vld [vmem:[%s197 + $0x6e0] sm:$0xff]
        %v444 = vld [vmem:[%s197 + $0x6e8] sm:$0xff]
        %v445 = vld [vmem:[%s197 + $0x6f0] sm:$0xff]
        %v446 = vld [vmem:[%s197 + $0x6f8] sm:$0xff]
        %v447 = vld [vmem:[%s197 + $0x700] sm:$0xff]
        %v448 = vld [vmem:[%s197 + $0x708] sm:$0xff]
        %v449 = vld [vmem:[%s197 + $0x710] sm:$0xff]
        %v450 = vld [vmem:[%s197 + $0x718] sm:$0xff]
        %v451 = vld [vmem:[%s197 + $0x720] sm:$0xff]
        %v452 = vld [vmem:[%s197 + $0x728] sm:$0xff]
        %v453 = vld [vmem:[%s197 + $0x730] sm:$0xff]
        %v454 = vld [vmem:[%s197 + $0x738] sm:$0xff]
        %v455 = vld [vmem:[%s197 + $0x740] sm:$0xff]
        %v456 = vld [vmem:[%s197 + $0x748] sm:$0xff]
        %v457 = vld [vmem:[%s197 + $0x750] sm:$0xff]
        %v458 = vld [vmem:[%s197 + $0x758] sm:$0xff]
        %v459 = vld [vmem:[%s197 + $0x760] sm:$0xff]
        %v460 = vld [vmem:[%s197 + $0x768] sm:$0xff]
        %v461 = vld [vmem:[%s197 + $0x770] sm:$0xff]
        %v462 = vld [vmem:[%s197 + $0x778] sm:$0xff]
        %v463 = vld [vmem:[%s197 + $0x780] sm:$0xff]
        %v464 = vld [vmem:[%s197 + $0x788] sm:$0xff]
        %v465 = vld [vmem:[%s197 + $0x790] sm:$0xff]
        %v466 = vld [vmem:[%s197 + $0x798] sm:$0xff]
        %v467 = vld [vmem:[%s197 + $0x7a0] sm:$0xff]
        %v468 = vld [vmem:[%s197 + $0x7a8] sm:$0xff]
        %v469 = vld [vmem:[%s197 + $0x7b0] sm:$0xff]
        %v470 = vld [vmem:[%s197 + $0x7b8] sm:$0xff]
        %v471 = vld [vmem:[%s197 + $0x7c0] sm:$0xff]
        %v472 = vld [vmem:[%s197 + $0x7c8] sm:$0xff]
        %v473 = vld [vmem:[%s197 + $0x7d0] sm:$0xff]
        %v474 = vld [vmem:[%s197 + $0x7d8] sm:$0xff]
        %v475 = vld [vmem:[%s197 + $0x7e0] sm:$0xff]
        %v476 = vld [vmem:[%s197 + $0x7e8] sm:$0xff]
        %v477 = vld [vmem:[%s197 + $0x7f0] sm:$0xff]
        %v478 = vld [vmem:[%s197 + $0x7f8] sm:$0xff]
        %v479 = vld [vmem:[%s1] sm:$0xff]
        %481 = vset.pattern.permute.xlu0 0
        %482 = vperm.xlu0 %481, %v479
        %v483 = vpop.permute.xlu0 %482
        %vm485 = vcmask 523264
        %v487 = vsel %vm485, %v222, 0
        %489 = vmatprep.subr.mxu0 %v224
        %490 = vmatpush1.msra.mxu0 %v223
        %491 = vmatprep.subr.mxu0 %v256
        %492 = vmatpush1.msra.mxu0 %v255
        %493 = vmatprep.subr.mxu0 %v288
        %494 = vmatpush1.msra.mxu0 %v287
        %495 = vmatprep.subr.mxu0 %v320
        %496 = vmatpush1.msra.mxu0 %v319
        %497 = vmatprep.subr.mxu0 %v352
        %498 = vmatpush1.msra.mxu0 %v351
        %499 = vmatprep.subr.mxu0 %v384
        %500 = vmatpush1.msra.mxu0 %v383
        %501 = vmatprep.subr.mxu0 %v416
        %502 = vmatpush1.msra.mxu0 %v415
        %503 = vmatprep.subr.mxu0 %v448
        %504 = vmatpush1.msra.mxu0 %v447
        %505 = vmatprep.subr.mxu0 0.0
        %506 = vmatpush1.msra.mxu0 0.0
        %507 = vmatprep.subr.mxu0 0.0
        %508 = vmatpush1.msra.mxu0 0.0
        %509 = vmatprep.subr.mxu0 0.0
        %510 = vmatpush1.msra.mxu0 0.0
        %511 = vmatprep.subr.mxu0 0.0
        %512 = vmatpush1.msra.mxu0 0.0
        %513 = vmatprep.subr.mxu0 0.0
        %514 = vmatpush1.msra.mxu0 0.0
        %515 = vmatprep.subr.mxu0 0.0
        %516 = vmatpush1.msra.mxu0 0.0
        %517 = vmatprep.subr.mxu0 0.0
        %518 = vmatpush1.msra.mxu0 0.0
        %519 = vmatprep.subr.mxu0 0.0
        %520 = vmatpush1.msra.mxu0 0.0
        %521 = vmatprep.subr.mxu0 0.0
        %522 = vmatpush1.msra.mxu0 0.0
        %523 = vmatprep.subr.mxu0 0.0
        %524 = vmatpush1.msra.mxu0 0.0
        %525 = vmatprep.subr.mxu0 0.0
        %526 = vmatpush1.msra.mxu0 0.0
        %527 = vmatprep.subr.mxu0 0.0
        %528 = vmatpush1.msra.mxu0 0.0
        %529 = vmatprep.subr.mxu0 0.0
        %530 = vmatpush1.msra.mxu0 0.0
        %531 = vmatprep.subr.mxu0 0.0
        %532 = vmatpush1.msra.mxu0 0.0
        %533 = vmatprep.subr.mxu0 0.0
        %534 = vmatpush1.msra.mxu0 0.0
        %535 = vmatprep.subr.mxu0 0.0
        %536 = vmatpush1.msra.mxu0 0.0
        %537 = vmatprep.subr.mxu0 0.0
        %538 = vmatpush1.msra.mxu0 0.0
        %539 = vmatprep.subr.mxu0 0.0
        %540 = vmatpush1.msra.mxu0 0.0
        %541 = vmatprep.subr.mxu0 0.0
        %542 = vmatpush1.msra.mxu0 0.0
        %543 = vmatprep.subr.mxu0 0.0
        %544 = vmatpush1.msra.mxu0 0.0
        %545 = vmatprep.subr.mxu0 0.0
        %546 = vmatpush1.msra.mxu0 0.0
        %547 = vmatprep.subr.mxu0 0.0
        %548 = vmatpush1.msra.mxu0 0.0
        %549 = vmatprep.subr.mxu0 0.0
        %550 = vmatpush1.msra.mxu0 0.0
        %551 = vmatprep.subr.mxu0 0.0
        %552 = vmatpush1.msra.mxu0 0.0
        %553 = vmatprep.mubr.f32.mxu0 0.0
        %554 = vmatmul.mubr.f32.gmra.mrb[0].mxu0 %v487
        %v555 = vpop.f32.mrb[0].mxu0
        %v556 = vadd.f32 %v483, %v555
        %v557 = vpop.f32.mrb[0].mxu0
        %v558 = vadd.f32 %v483, %v557
        %559 = vdwg.mxu0
        %560 = vmatprep.subr.mxu0 %v226
        %561 = vmatpush1.msra.mxu0 %v225
        %562 = vmatprep.subr.mxu0 %v258
        %563 = vmatpush1.msra.mxu0 %v257
        %564 = vmatprep.subr.mxu0 %v290
        %565 = vmatpush1.msra.mxu0 %v289
        %566 = vmatprep.subr.mxu0 %v322
        %567 = vmatpush1.msra.mxu0 %v321
        %568 = vmatprep.subr.mxu0 %v354
        %569 = vmatpush1.msra.mxu0 %v353
        %570 = vmatprep.subr.mxu0 %v386
        %571 = vmatpush1.msra.mxu0 %v385
        %572 = vmatprep.subr.mxu0 %v418
        %573 = vmatpush1.msra.mxu0 %v417
        %574 = vmatprep.subr.mxu0 %v450
        %575 = vmatpush1.msra.mxu0 %v449
        %576 = vmatprep.subr.mxu0 0.0
        %577 = vmatpush1.msra.mxu0 0.0
        %578 = vmatprep.subr.mxu0 0.0
        %579 = vmatpush1.msra.mxu0 0.0
        %580 = vmatprep.subr.mxu0 0.0
        %581 = vmatpush1.msra.mxu0 0.0
        %582 = vmatprep.subr.mxu0 0.0
        %583 = vmatpush1.msra.mxu0 0.0
        %584 = vmatprep.subr.mxu0 0.0
        %585 = vmatpush1.msra.mxu0 0.0
        %586 = vmatprep.subr.mxu0 0.0
        %587 = vmatpush1.msra.mxu0 0.0
        %588 = vmatprep.subr.mxu0 0.0
        %589 = vmatpush1.msra.mxu0 0.0
        %590 = vmatprep.subr.mxu0 0.0
        %591 = vmatpush1.msra.mxu0 0.0
        %592 = vmatprep.subr.mxu0 0.0
        %593 = vmatpush1.msra.mxu0 0.0
        %594 = vmatprep.subr.mxu0 0.0
        %595 = vmatpush1.msra.mxu0 0.0
        %596 = vmatprep.subr.mxu0 0.0
        %597 = vmatpush1.msra.mxu0 0.0
        %598 = vmatprep.subr.mxu0 0.0
        %599 = vmatpush1.msra.mxu0 0.0
        %600 = vmatprep.subr.mxu0 0.0
        %601 = vmatpush1.msra.mxu0 0.0
        %602 = vmatprep.subr.mxu0 0.0
        %603 = vmatpush1.msra.mxu0 0.0
        %604 = vmatprep.subr.mxu0 0.0
        %605 = vmatpush1.msra.mxu0 0.0
        %606 = vmatprep.subr.mxu0 0.0
        %607 = vmatpush1.msra.mxu0 0.0
        %608 = vmatprep.subr.mxu0 0.0
        %609 = vmatpush1.msra.mxu0 0.0
        %610 = vmatprep.subr.mxu0 0.0
        %611 = vmatpush1.msra.mxu0 0.0
        %612 = vmatprep.subr.mxu0 0.0
        %613 = vmatpush1.msra.mxu0 0.0
        %614 = vmatprep.subr.mxu0 0.0
        %615 = vmatpush1.msra.mxu0 0.0
        %616 = vmatprep.subr.mxu0 0.0
        %617 = vmatpush1.msra.mxu0 0.0
        %618 = vmatprep.subr.mxu0 0.0
        %619 = vmatpush1.msra.mxu0 0.0
        %620 = vmatprep.subr.mxu0 0.0
        %621 = vmatpush1.msra.mxu0 0.0
        %622 = vmatprep.subr.mxu0 0.0
        %623 = vmatpush1.msra.mxu0 0.0
        %624 = vmatprep.mubr.f32.mxu0 0.0
        %625 = vmatmul.mubr.f32.gmra.mrb[0].mxu0 %v487
        %v626 = vpop.f32.mrb[0].mxu0
        %v627 = vadd.f32 %v483, %v626
        %v628 = vpop.f32.mrb[0].mxu0
        %v629 = vadd.f32 %v483, %v628
        %630 = vdwg.mxu0
        %631 = vmatprep.subr.mxu0 %v228
        %632 = vmatpush1.msra.mxu0 %v227
        %633 = vmatprep.subr.mxu0 %v260
        %634 = vmatpush1.msra.mxu0 %v259
        %635 = vmatprep.subr.mxu0 %v292
        %636 = vmatpush1.msra.mxu0 %v291
        %637 = vmatprep.subr.mxu0 %v324
        %638 = vmatpush1.msra.mxu0 %v323
        %639 = vmatprep.subr.mxu0 %v356
        %640 = vmatpush1.msra.mxu0 %v355
        %641 = vmatprep.subr.mxu0 %v388
        %642 = vmatpush1.msra.mxu0 %v387
        %643 = vmatprep.subr.mxu0 %v420
        %644 = vmatpush1.msra.mxu0 %v419
        %645 = vmatprep.subr.mxu0 %v452
        %646 = vmatpush1.msra.mxu0 %v451
        %647 = vmatprep.subr.mxu0 0.0
        %648 = vmatpush1.msra.mxu0 0.0
        %649 = vmatprep.subr.mxu0 0.0
        %650 = vmatpush1.msra.mxu0 0.0
        %651 = vmatprep.subr.mxu0 0.0
        %652 = vmatpush1.msra.mxu0 0.0
        %653 = vmatprep.subr.mxu0 0.0
        %654 = vmatpush1.msra.mxu0 0.0
        %655 = vmatprep.subr.mxu0 0.0
        %656 = vmatpush1.msra.mxu0 0.0
        %657 = vmatprep.subr.mxu0 0.0
        %658 = vmatpush1.msra.mxu0 0.0
        %659 = vmatprep.subr.mxu0 0.0
        %660 = vmatpush1.msra.mxu0 0.0
        %661 = vmatprep.subr.mxu0 0.0
        %662 = vmatpush1.msra.mxu0 0.0
        %663 = vmatprep.subr.mxu0 0.0
        %664 = vmatpush1.msra.mxu0 0.0
        %665 = vmatprep.subr.mxu0 0.0
        %666 = vmatpush1.msra.mxu0 0.0
        %667 = vmatprep.subr.mxu0 0.0
        %668 = vmatpush1.msra.mxu0 0.0
        %669 = vmatprep.subr.mxu0 0.0
        %670 = vmatpush1.msra.mxu0 0.0
        %671 = vmatprep.subr.mxu0 0.0
        %672 = vmatpush1.msra.mxu0 0.0
        %673 = vmatprep.subr.mxu0 0.0
        %674 = vmatpush1.msra.mxu0 0.0
        %675 = vmatprep.subr.mxu0 0.0
        %676 = vmatpush1.msra.mxu0 0.0
        %677 = vmatprep.subr.mxu0 0.0
        %678 = vmatpush1.msra.mxu0 0.0
        %679 = vmatprep.subr.mxu0 0.0
        %680 = vmatpush1.msra.mxu0 0.0
        %681 = vmatprep.subr.mxu0 0.0
        %682 = vmatpush1.msra.mxu0 0.0
        %683 = vmatprep.subr.mxu0 0.0
        %684 = vmatpush1.msra.mxu0 0.0
        %685 = vmatprep.subr.mxu0 0.0
        %686 = vmatpush1.msra.mxu0 0.0
        %687 = vmatprep.subr.mxu0 0.0
        %688 = vmatpush1.msra.mxu0 0.0
        %689 = vmatprep.subr.mxu0 0.0
        %690 = vmatpush1.msra.mxu0 0.0
        %691 = vmatprep.subr.mxu0 0.0
        %692 = vmatpush1.msra.mxu0 0.0
        %693 = vmatprep.subr.mxu0 0.0
        %694 = vmatpush1.msra.mxu0 0.0
        %695 = vmatprep.mubr.f32.mxu0 0.0
        %696 = vmatmul.mubr.f32.gmra.mrb[0].mxu0 %v487
        %v697 = vpop.f32.mrb[0].mxu0
        %v698 = vadd.f32 %v483, %v697
        %v699 = vpop.f32.mrb[0].mxu0
        %v700 = vadd.f32 %v483, %v699
        %701 = vdwg.mxu0
        %702 = vmatprep.subr.mxu0 %v230
        %703 = vmatpush1.msra.mxu0 %v229
        %704 = vmatprep.subr.mxu0 %v262
        %705 = vmatpush1.msra.mxu0 %v261
        %706 = vmatprep.subr.mxu0 %v294
        %707 = vmatpush1.msra.mxu0 %v293
        %708 = vmatprep.subr.mxu0 %v326
        %709 = vmatpush1.msra.mxu0 %v325
        %710 = vmatprep.subr.mxu0 %v358
        %711 = vmatpush1.msra.mxu0 %v357
        %712 = vmatprep.subr.mxu0 %v390
        %713 = vmatpush1.msra.mxu0 %v389
        %714 = vmatprep.subr.mxu0 %v422
        %715 = vmatpush1.msra.mxu0 %v421
        %716 = vmatprep.subr.mxu0 %v454
        %717 = vmatpush1.msra.mxu0 %v453
        %718 = vmatprep.subr.mxu0 0.0
        %719 = vmatpush1.msra.mxu0 0.0
        %720 = vmatprep.subr.mxu0 0.0
        %721 = vmatpush1.msra.mxu0 0.0
        %722 = vmatprep.subr.mxu0 0.0
        %723 = vmatpush1.msra.mxu0 0.0
        %724 = vmatprep.subr.mxu0 0.0
        %725 = vmatpush1.msra.mxu0 0.0
        %726 = vmatprep.subr.mxu0 0.0
        %727 = vmatpush1.msra.mxu0 0.0
        %728 = vmatprep.subr.mxu0 0.0
        %729 = vmatpush1.msra.mxu0 0.0
        %730 = vmatprep.subr.mxu0 0.0
        %731 = vmatpush1.msra.mxu0 0.0
        %732 = vmatprep.subr.mxu0 0.0
        %733 = vmatpush1.msra.mxu0 0.0
        %734 = vmatprep.subr.mxu0 0.0
        %735 = vmatpush1.msra.mxu0 0.0
        %736 = vmatprep.subr.mxu0 0.0
        %737 = vmatpush1.msra.mxu0 0.0
        %738 = vmatprep.subr.mxu0 0.0
        %739 = vmatpush1.msra.mxu0 0.0
        %740 = vmatprep.subr.mxu0 0.0
        %741 = vmatpush1.msra.mxu0 0.0
        %742 = vmatprep.subr.mxu0 0.0
        %743 = vmatpush1.msra.mxu0 0.0
        %744 = vmatprep.subr.mxu0 0.0
        %745 = vmatpush1.msra.mxu0 0.0
        %746 = vmatprep.subr.mxu0 0.0
        %747 = vmatpush1.msra.mxu0 0.0
        %748 = vmatprep.subr.mxu0 0.0
        %749 = vmatpush1.msra.mxu0 0.0
        %750 = vmatprep.subr.mxu0 0.0
        %751 = vmatpush1.msra.mxu0 0.0
        %752 = vmatprep.subr.mxu0 0.0
        %753 = vmatpush1.msra.mxu0 0.0
        %754 = vmatprep.subr.mxu0 0.0
        %755 = vmatpush1.msra.mxu0 0.0
        %756 = vmatprep.subr.mxu0 0.0
        %757 = vmatpush1.msra.mxu0 0.0
        %758 = vmatprep.subr.mxu0 0.0
        %759 = vmatpush1.msra.mxu0 0.0
        %760 = vmatprep.subr.mxu0 0.0
        %761 = vmatpush1.msra.mxu0 0.0
        %762 = vmatprep.subr.mxu0 0.0
        %763 = vmatpush1.msra.mxu0 0.0
        %764 = vmatprep.subr.mxu0 0.0
        %765 = vmatpush1.msra.mxu0 0.0
        %766 = vmatprep.mubr.f32.mxu0 0.0
        %767 = vmatmul.mubr.f32.gmra.mrb[0].mxu0 %v487
        %v768 = vpop.f32.mrb[0].mxu0
        %v769 = vadd.f32 %v483, %v768
        %v770 = vpop.f32.mrb[0].mxu0
        %v771 = vadd.f32 %v483, %v770
        %772 = vdwg.mxu0
        %773 = vmatprep.subr.mxu0 %v232
        %774 = vmatpush1.msra.mxu0 %v231
        %775 = vmatprep.subr.mxu0 %v264
        %776 = vmatpush1.msra.mxu0 %v263
        %777 = vmatprep.subr.mxu0 %v296
        %778 = vmatpush1.msra.mxu0 %v295
        %779 = vmatprep.subr.mxu0 %v328
        %780 = vmatpush1.msra.mxu0 %v327
        %781 = vmatprep.subr.mxu0 %v360
        %782 = vmatpush1.msra.mxu0 %v359
        %783 = vmatprep.subr.mxu0 %v392
        %784 = vmatpush1.msra.mxu0 %v391
        %785 = vmatprep.subr.mxu0 %v424
        %786 = vmatpush1.msra.mxu0 %v423
        %787 = vmatprep.subr.mxu0 %v456
        %788 = vmatpush1.msra.mxu0 %v455
        %789 = vmatprep.subr.mxu0 0.0
        %790 = vmatpush1.msra.mxu0 0.0
        %791 = vmatprep.subr.mxu0 0.0
        %792 = vmatpush1.msra.mxu0 0.0
        %793 = vmatprep.subr.mxu0 0.0
        %794 = vmatpush1.msra.mxu0 0.0
        %795 = vmatprep.subr.mxu0 0.0
        %796 = vmatpush1.msra.mxu0 0.0
        %797 = vmatprep.subr.mxu0 0.0
        %798 = vmatpush1.msra.mxu0 0.0
        %799 = vmatprep.subr.mxu0 0.0
        %800 = vmatpush1.msra.mxu0 0.0
        %801 = vmatprep.subr.mxu0 0.0
        %802 = vmatpush1.msra.mxu0 0.0
        %803 = vmatprep.subr.mxu0 0.0
        %804 = vmatpush1.msra.mxu0 0.0
        %805 = vmatprep.subr.mxu0 0.0
        %806 = vmatpush1.msra.mxu0 0.0
        %807 = vmatprep.subr.mxu0 0.0
        %808 = vmatpush1.msra.mxu0 0.0
        %809 = vmatprep.subr.mxu0 0.0
        %810 = vmatpush1.msra.mxu0 0.0
        %811 = vmatprep.subr.mxu0 0.0
        %812 = vmatpush1.msra.mxu0 0.0
        %813 = vmatprep.subr.mxu0 0.0
        %814 = vmatpush1.msra.mxu0 0.0
        %815 = vmatprep.subr.mxu0 0.0
        %816 = vmatpush1.msra.mxu0 0.0
        %817 = vmatprep.subr.mxu0 0.0
        %818 = vmatpush1.msra.mxu0 0.0
        %819 = vmatprep.subr.mxu0 0.0
        %820 = vmatpush1.msra.mxu0 0.0
        %821 = vmatprep.subr.mxu0 0.0
        %822 = vmatpush1.msra.mxu0 0.0
        %823 = vmatprep.subr.mxu0 0.0
        %824 = vmatpush1.msra.mxu0 0.0
        %825 = vmatprep.subr.mxu0 0.0
        %826 = vmatpush1.msra.mxu0 0.0
        %827 = vmatprep.subr.mxu0 0.0
        %828 = vmatpush1.msra.mxu0 0.0
        %829 = vmatprep.subr.mxu0 0.0
        %830 = vmatpush1.msra.mxu0 0.0
        %831 = vmatprep.subr.mxu0 0.0
        %832 = vmatpush1.msra.mxu0 0.0
        %833 = vmatprep.subr.mxu0 0.0
        %834 = vmatpush1.msra.mxu0 0.0
        %835 = vmatprep.subr.mxu0 0.0
        %836 = vmatpush1.msra.mxu0 0.0
        %837 = vmatprep.mubr.f32.mxu0 0.0
        %838 = vmatmul.mubr.f32.gmra.mrb[0].mxu0 %v487
        %v839 = vpop.f32.mrb[0].mxu0
        %v840 = vadd.f32 %v483, %v839
        %v841 = vpop.f32.mrb[0].mxu0
        %v842 = vadd.f32 %v483, %v841
        %843 = vdwg.mxu0
        %844 = vmatprep.subr.mxu0 %v234
        %845 = vmatpush1.msra.mxu0 %v233
        %846 = vmatprep.subr.mxu0 %v266
        %847 = vmatpush1.msra.mxu0 %v265
        %848 = vmatprep.subr.mxu0 %v298
        %849 = vmatpush1.msra.mxu0 %v297
        %850 = vmatprep.subr.mxu0 %v330
        %851 = vmatpush1.msra.mxu0 %v329
        %852 = vmatprep.subr.mxu0 %v362
        %853 = vmatpush1.msra.mxu0 %v361
        %854 = vmatprep.subr.mxu0 %v394
        %855 = vmatpush1.msra.mxu0 %v393
        %856 = vmatprep.subr.mxu0 %v426
        %857 = vmatpush1.msra.mxu0 %v425
        %858 = vmatprep.subr.mxu0 %v458
        %859 = vmatpush1.msra.mxu0 %v457
        %860 = vmatprep.subr.mxu0 0.0
        %861 = vmatpush1.msra.mxu0 0.0
        %862 = vmatprep.subr.mxu0 0.0
        %863 = vmatpush1.msra.mxu0 0.0
        %864 = vmatprep.subr.mxu0 0.0
        %865 = vmatpush1.msra.mxu0 0.0
        %866 = vmatprep.subr.mxu0 0.0
        %867 = vmatpush1.msra.mxu0 0.0
        %868 = vmatprep.subr.mxu0 0.0
        %869 = vmatpush1.msra.mxu0 0.0
        %870 = vmatprep.subr.mxu0 0.0
        %871 = vmatpush1.msra.mxu0 0.0
        %872 = vmatprep.subr.mxu0 0.0
        %873 = vmatpush1.msra.mxu0 0.0
        %874 = vmatprep.subr.mxu0 0.0
        %875 = vmatpush1.msra.mxu0 0.0
        %876 = vmatprep.subr.mxu0 0.0
        %877 = vmatpush1.msra.mxu0 0.0
        %878 = vmatprep.subr.mxu0 0.0
        %879 = vmatpush1.msra.mxu0 0.0
        %880 = vmatprep.subr.mxu0 0.0
        %881 = vmatpush1.msra.mxu0 0.0
        %882 = vmatprep.subr.mxu0 0.0
        %883 = vmatpush1.msra.mxu0 0.0
        %884 = vmatprep.subr.mxu0 0.0
        %885 = vmatpush1.msra.mxu0 0.0
        %886 = vmatprep.subr.mxu0 0.0
        %887 = vmatpush1.msra.mxu0 0.0
        %888 = vmatprep.subr.mxu0 0.0
        %889 = vmatpush1.msra.mxu0 0.0
        %890 = vmatprep.subr.mxu0 0.0
        %891 = vmatpush1.msra.mxu0 0.0
        %892 = vmatprep.subr.mxu0 0.0
        %893 = vmatpush1.msra.mxu0 0.0
        %894 = vmatprep.subr.mxu0 0.0
        %895 = vmatpush1.msra.mxu0 0.0
        %896 = vmatprep.subr.mxu0 0.0
        %897 = vmatpush1.msra.mxu0 0.0
        %898 = vmatprep.subr.mxu0 0.0
        %899 = vmatpush1.msra.mxu0 0.0
        %900 = vmatprep.subr.mxu0 0.0
        %901 = vmatpush1.msra.mxu0 0.0
        %902 = vmatprep.subr.mxu0 0.0
        %903 = vmatpush1.msra.mxu0 0.0
        %904 = vmatprep.subr.mxu0 0.0
        %905 = vmatpush1.msra.mxu0 0.0
        %906 = vmatprep.subr.mxu0 0.0
        %907 = vmatpush1.msra.mxu0 0.0
        %908 = vmatprep.mubr.f32.mxu0 0.0
        %909 = vmatmul.mubr.f32.gmra.mrb[0].mxu0 %v487
        %v910 = vpop.f32.mrb[0].mxu0
        %v911 = vadd.f32 %v483, %v910
        %v912 = vpop.f32.mrb[0].mxu0
        %v913 = vadd.f32 %v483, %v912
        %914 = vdwg.mxu0
        %915 = vmatprep.subr.mxu0 %v236
        %916 = vmatpush1.msra.mxu0 %v235
        %917 = vmatprep.subr.mxu0 %v268
        %918 = vmatpush1.msra.mxu0 %v267
        %919 = vmatprep.subr.mxu0 %v300
        %920 = vmatpush1.msra.mxu0 %v299
        %921 = vmatprep.subr.mxu0 %v332
        %922 = vmatpush1.msra.mxu0 %v331
        %923 = vmatprep.subr.mxu0 %v364
        %924 = vmatpush1.msra.mxu0 %v363
        %925 = vmatprep.subr.mxu0 %v396
        %926 = vmatpush1.msra.mxu0 %v395
        %927 = vmatprep.subr.mxu0 %v428
        %928 = vmatpush1.msra.mxu0 %v427
        %929 = vmatprep.subr.mxu0 %v460
        %930 = vmatpush1.msra.mxu0 %v459
        %931 = vmatprep.subr.mxu0 0.0
        %932 = vmatpush1.msra.mxu0 0.0
        %933 = vmatprep.subr.mxu0 0.0
        %934 = vmatpush1.msra.mxu0 0.0
        %935 = vmatprep.subr.mxu0 0.0
        %936 = vmatpush1.msra.mxu0 0.0
        %937 = vmatprep.subr.mxu0 0.0
        %938 = vmatpush1.msra.mxu0 0.0
        %939 = vmatprep.subr.mxu0 0.0
        %940 = vmatpush1.msra.mxu0 0.0
        %941 = vmatprep.subr.mxu0 0.0
        %942 = vmatpush1.msra.mxu0 0.0
        %943 = vmatprep.subr.mxu0 0.0
        %944 = vmatpush1.msra.mxu0 0.0
        %945 = vmatprep.subr.mxu0 0.0
        %946 = vmatpush1.msra.mxu0 0.0
        %947 = vmatprep.subr.mxu0 0.0
        %948 = vmatpush1.msra.mxu0 0.0
        %949 = vmatprep.subr.mxu0 0.0
        %950 = vmatpush1.msra.mxu0 0.0
        %951 = vmatprep.subr.mxu0 0.0
        %952 = vmatpush1.msra.mxu0 0.0
        %953 = vmatprep.subr.mxu0 0.0
        %954 = vmatpush1.msra.mxu0 0.0
        %955 = vmatprep.subr.mxu0 0.0
        %956 = vmatpush1.msra.mxu0 0.0
        %957 = vmatprep.subr.mxu0 0.0
        %958 = vmatpush1.msra.mxu0 0.0
        %959 = vmatprep.subr.mxu0 0.0
        %960 = vmatpush1.msra.mxu0 0.0
        %961 = vmatprep.subr.mxu0 0.0
        %962 = vmatpush1.msra.mxu0 0.0
        %963 = vmatprep.subr.mxu0 0.0
        %964 = vmatpush1.msra.mxu0 0.0
        %965 = vmatprep.subr.mxu0 0.0
        %966 = vmatpush1.msra.mxu0 0.0
        %967 = vmatprep.subr.mxu0 0.0
        %968 = vmatpush1.msra.mxu0 0.0
        %969 = vmatprep.subr.mxu0 0.0
        %970 = vmatpush1.msra.mxu0 0.0
        %971 = vmatprep.subr.mxu0 0.0
        %972 = vmatpush1.msra.mxu0 0.0
        %973 = vmatprep.subr.mxu0 0.0
        %974 = vmatpush1.msra.mxu0 0.0
        %975 = vmatprep.subr.mxu0 0.0
        %976 = vmatpush1.msra.mxu0 0.0
        %977 = vmatprep.subr.mxu0 0.0
        %978 = vmatpush1.msra.mxu0 0.0
        %979 = vmatprep.mubr.f32.mxu0 0.0
        %980 = vmatmul.mubr.f32.gmra.mrb[0].mxu0 %v487
        %v981 = vpop.f32.mrb[0].mxu0
        %v982 = vadd.f32 %v483, %v981
        %v983 = vpop.f32.mrb[0].mxu0
        %v984 = vadd.f32 %v483, %v983
        %985 = vdwg.mxu0
        %986 = vmatprep.subr.mxu0 %v238
        %987 = vmatpush1.msra.mxu0 %v237
        %988 = vmatprep.subr.mxu0 %v270
        %989 = vmatpush1.msra.mxu0 %v269
        %990 = vmatprep.subr.mxu0 %v302
        %991 = vmatpush1.msra.mxu0 %v301
        %992 = vmatprep.subr.mxu0 %v334
        %993 = vmatpush1.msra.mxu0 %v333
        %994 = vmatprep.subr.mxu0 %v366
        %995 = vmatpush1.msra.mxu0 %v365
        %996 = vmatprep.subr.mxu0 %v398
        %997 = vmatpush1.msra.mxu0 %v397
        %998 = vmatprep.subr.mxu0 %v430
        %999 = vmatpush1.msra.mxu0 %v429
        %1000 = vmatprep.subr.mxu0 %v462
        %1001 = vmatpush1.msra.mxu0 %v461
        %1002 = vmatprep.subr.mxu0 0.0
        %1003 = vmatpush1.msra.mxu0 0.0
        %1004 = vmatprep.subr.mxu0 0.0
        %1005 = vmatpush1.msra.mxu0 0.0
        %1006 = vmatprep.subr.mxu0 0.0
        %1007 = vmatpush1.msra.mxu0 0.0
        %1008 = vmatprep.subr.mxu0 0.0
        %1009 = vmatpush1.msra.mxu0 0.0
        %1010 = vmatprep.subr.mxu0 0.0
        %1011 = vmatpush1.msra.mxu0 0.0
        %1012 = vmatprep.subr.mxu0 0.0
        %1013 = vmatpush1.msra.mxu0 0.0
        %1014 = vmatprep.subr.mxu0 0.0
        %1015 = vmatpush1.msra.mxu0 0.0
        %1016 = vmatprep.subr.mxu0 0.0
        %1017 = vmatpush1.msra.mxu0 0.0
        %1018 = vmatprep.subr.mxu0 0.0
        %1019 = vmatpush1.msra.mxu0 0.0
        %1020 = vmatprep.subr.mxu0 0.0
        %1021 = vmatpush1.msra.mxu0 0.0
        %1022 = vmatprep.subr.mxu0 0.0
        %1023 = vmatpush1.msra.mxu0 0.0
        %1024 = vmatprep.subr.mxu0 0.0
        %1025 = vmatpush1.msra.mxu0 0.0
        %1026 = vmatprep.subr.mxu0 0.0
        %1027 = vmatpush1.msra.mxu0 0.0
        %1028 = vmatprep.subr.mxu0 0.0
        %1029 = vmatpush1.msra.mxu0 0.0
        %1030 = vmatprep.subr.mxu0 0.0
        %1031 = vmatpush1.msra.mxu0 0.0
        %1032 = vmatprep.subr.mxu0 0.0
        %1033 = vmatpush1.msra.mxu0 0.0
        %1034 = vmatprep.subr.mxu0 0.0
        %1035 = vmatpush1.msra.mxu0 0.0
        %1036 = vmatprep.subr.mxu0 0.0
        %1037 = vmatpush1.msra.mxu0 0.0
        %1038 = vmatprep.subr.mxu0 0.0
        %1039 = vmatpush1.msra.mxu0 0.0
        %1040 = vmatprep.subr.mxu0 0.0
        %1041 = vmatpush1.msra.mxu0 0.0
        %1042 = vmatprep.subr.mxu0 0.0
        %1043 = vmatpush1.msra.mxu0 0.0
        %1044 = vmatprep.subr.mxu0 0.0
        %1045 = vmatpush1.msra.mxu0 0.0
        %1046 = vmatprep.subr.mxu0 0.0
        %1047 = vmatpush1.msra.mxu0 0.0
        %1048 = vmatprep.subr.mxu0 0.0
        %1049 = vmatpush1.msra.mxu0 0.0
        %1050 = vmatprep.mubr.f32.mxu0 0.0
        %1051 = vmatmul.mubr.f32.gmra.mrb[0].mxu0 %v487
        %v1052 = vpop.f32.mrb[0].mxu0
        %v1053 = vadd.f32 %v483, %v1052
        %v1054 = vpop.f32.mrb[0].mxu0
        %v1055 = vadd.f32 %v483, %v1054
        %1056 = vdwg.mxu0
        %1057 = vmatprep.subr.mxu0 %v240
        %1058 = vmatpush1.msra.mxu0 %v239
        %1059 = vmatprep.subr.mxu0 %v272
        %1060 = vmatpush1.msra.mxu0 %v271
        %1061 = vmatprep.subr.mxu0 %v304
        %1062 = vmatpush1.msra.mxu0 %v303
        %1063 = vmatprep.subr.mxu0 %v336
        %1064 = vmatpush1.msra.mxu0 %v335
        %1065 = vmatprep.subr.mxu0 %v368
        %1066 = vmatpush1.msra.mxu0 %v367
        %1067 = vmatprep.subr.mxu0 %v400
        %1068 = vmatpush1.msra.mxu0 %v399
        %1069 = vmatprep.subr.mxu0 %v432
        %1070 = vmatpush1.msra.mxu0 %v431
        %1071 = vmatprep.subr.mxu0 %v464
        %1072 = vmatpush1.msra.mxu0 %v463
        %1073 = vmatprep.subr.mxu0 0.0
        %1074 = vmatpush1.msra.mxu0 0.0
        %1075 = vmatprep.subr.mxu0 0.0
        %1076 = vmatpush1.msra.mxu0 0.0
        %1077 = vmatprep.subr.mxu0 0.0
        %1078 = vmatpush1.msra.mxu0 0.0
        %1079 = vmatprep.subr.mxu0 0.0
        %1080 = vmatpush1.msra.mxu0 0.0
        %1081 = vmatprep.subr.mxu0 0.0
        %1082 = vmatpush1.msra.mxu0 0.0
        %1083 = vmatprep.subr.mxu0 0.0
        %1084 = vmatpush1.msra.mxu0 0.0
        %1085 = vmatprep.subr.mxu0 0.0
        %1086 = vmatpush1.msra.mxu0 0.0
        %1087 = vmatprep.subr.mxu0 0.0
        %1088 = vmatpush1.msra.mxu0 0.0
        %1089 = vmatprep.subr.mxu0 0.0
        %1090 = vmatpush1.msra.mxu0 0.0
        %1091 = vmatprep.subr.mxu0 0.0
        %1092 = vmatpush1.msra.mxu0 0.0
        %1093 = vmatprep.subr.mxu0 0.0
        %1094 = vmatpush1.msra.mxu0 0.0
        %1095 = vmatprep.subr.mxu0 0.0
        %1096 = vmatpush1.msra.mxu0 0.0
        %1097 = vmatprep.subr.mxu0 0.0
        %1098 = vmatpush1.msra.mxu0 0.0
        %1099 = vmatprep.subr.mxu0 0.0
        %1100 = vmatpush1.msra.mxu0 0.0
        %1101 = vmatprep.subr.mxu0 0.0
        %1102 = vmatpush1.msra.mxu0 0.0
        %1103 = vmatprep.subr.mxu0 0.0
        %1104 = vmatpush1.msra.mxu0 0.0
        %1105 = vmatprep.subr.mxu0 0.0
        %1106 = vmatpush1.msra.mxu0 0.0
        %1107 = vmatprep.subr.mxu0 0.0
        %1108 = vmatpush1.msra.mxu0 0.0
        %1109 = vmatprep.subr.mxu0 0.0
        %1110 = vmatpush1.msra.mxu0 0.0
        %1111 = vmatprep.subr.mxu0 0.0
        %1112 = vmatpush1.msra.mxu0 0.0
        %1113 = vmatprep.subr.mxu0 0.0
        %1114 = vmatpush1.msra.mxu0 0.0
        %1115 = vmatprep.subr.mxu0 0.0
        %1116 = vmatpush1.msra.mxu0 0.0
        %1117 = vmatprep.subr.mxu0 0.0
        %1118 = vmatpush1.msra.mxu0 0.0
        %1119 = vmatprep.subr.mxu0 0.0
        %1120 = vmatpush1.msra.mxu0 0.0
        %1121 = vmatprep.mubr.f32.mxu0 0.0
        %1122 = vmatmul.mubr.f32.gmra.mrb[0].mxu0 %v487
        %v1123 = vpop.f32.mrb[0].mxu0
        %v1124 = vadd.f32 %v483, %v1123
        %v1125 = vpop.f32.mrb[0].mxu0
        %v1126 = vadd.f32 %v483, %v1125
        %1127 = vdwg.mxu0
        %1128 = vmatprep.subr.mxu0 %v242
        %1129 = vmatpush1.msra.mxu0 %v241
        %1130 = vmatprep.subr.mxu0 %v274
        %1131 = vmatpush1.msra.mxu0 %v273
        %1132 = vmatprep.subr.mxu0 %v306
        %1133 = vmatpush1.msra.mxu0 %v305
        %1134 = vmatprep.subr.mxu0 %v338
        %1135 = vmatpush1.msra.mxu0 %v337
        %1136 = vmatprep.subr.mxu0 %v370
        %1137 = vmatpush1.msra.mxu0 %v369
        %1138 = vmatprep.subr.mxu0 %v402
        %1139 = vmatpush1.msra.mxu0 %v401
        %1140 = vmatprep.subr.mxu0 %v434
        %1141 = vmatpush1.msra.mxu0 %v433
        %1142 = vmatprep.subr.mxu0 %v466
        %1143 = vmatpush1.msra.mxu0 %v465
        %1144 = vmatprep.subr.mxu0 0.0
        %1145 = vmatpush1.msra.mxu0 0.0
        %1146 = vmatprep.subr.mxu0 0.0
        %1147 = vmatpush1.msra.mxu0 0.0
        %1148 = vmatprep.subr.mxu0 0.0
        %1149 = vmatpush1.msra.mxu0 0.0
        %1150 = vmatprep.subr.mxu0 0.0
        %1151 = vmatpush1.msra.mxu0 0.0
        %1152 = vmatprep.subr.mxu0 0.0
        %1153 = vmatpush1.msra.mxu0 0.0
        %1154 = vmatprep.subr.mxu0 0.0
        %1155 = vmatpush1.msra.mxu0 0.0
        %1156 = vmatprep.subr.mxu0 0.0
        %1157 = vmatpush1.msra.mxu0 0.0
        %1158 = vmatprep.subr.mxu0 0.0
        %1159 = vmatpush1.msra.mxu0 0.0
        %1160 = vmatprep.subr.mxu0 0.0
        %1161 = vmatpush1.msra.mxu0 0.0
        %1162 = vmatprep.subr.mxu0 0.0
        %1163 = vmatpush1.msra.mxu0 0.0
        %1164 = vmatprep.subr.mxu0 0.0
        %1165 = vmatpush1.msra.mxu0 0.0
        %1166 = vmatprep.subr.mxu0 0.0
        %1167 = vmatpush1.msra.mxu0 0.0
        %1168 = vmatprep.subr.mxu0 0.0
        %1169 = vmatpush1.msra.mxu0 0.0
        %1170 = vmatprep.subr.mxu0 0.0
        %1171 = vmatpush1.msra.mxu0 0.0
        %1172 = vmatprep.subr.mxu0 0.0
        %1173 = vmatpush1.msra.mxu0 0.0
        %1174 = vmatprep.subr.mxu0 0.0
        %1175 = vmatpush1.msra.mxu0 0.0
        %1176 = vmatprep.subr.mxu0 0.0
        %1177 = vmatpush1.msra.mxu0 0.0
        %1178 = vmatprep.subr.mxu0 0.0
        %1179 = vmatpush1.msra.mxu0 0.0
        %1180 = vmatprep.subr.mxu0 0.0
        %1181 = vmatpush1.msra.mxu0 0.0
        %1182 = vmatprep.subr.mxu0 0.0
        %1183 = vmatpush1.msra.mxu0 0.0
        %1184 = vmatprep.subr.mxu0 0.0
        %1185 = vmatpush1.msra.mxu0 0.0
        %1186 = vmatprep.subr.mxu0 0.0
        %1187 = vmatpush1.msra.mxu0 0.0
        %1188 = vmatprep.subr.mxu0 0.0
        %1189 = vmatpush1.msra.mxu0 0.0
        %1190 = vmatprep.subr.mxu0 0.0
        %1191 = vmatpush1.msra.mxu0 0.0
        %1192 = vmatprep.mubr.f32.mxu0 0.0
        %1193 = vmatmul.mubr.f32.gmra.mrb[0].mxu0 %v487
        %v1194 = vpop.f32.mrb[0].mxu0
        %v1195 = vadd.f32 %v483, %v1194
        %v1196 = vpop.f32.mrb[0].mxu0
        %v1197 = vadd.f32 %v483, %v1196
        %1198 = vdwg.mxu0
        %1199 = vmatprep.subr.mxu0 %v244
        %1200 = vmatpush1.msra.mxu0 %v243
        %1201 = vmatprep.subr.mxu0 %v276
        %1202 = vmatpush1.msra.mxu0 %v275
        %1203 = vmatprep.subr.mxu0 %v308
        %1204 = vmatpush1.msra.mxu0 %v307
        %1205 = vmatprep.subr.mxu0 %v340
        %1206 = vmatpush1.msra.mxu0 %v339
        %1207 = vmatprep.subr.mxu0 %v372
        %1208 = vmatpush1.msra.mxu0 %v371
        %1209 = vmatprep.subr.mxu0 %v404
        %1210 = vmatpush1.msra.mxu0 %v403
        %1211 = vmatprep.subr.mxu0 %v436
        %1212 = vmatpush1.msra.mxu0 %v435
        %1213 = vmatprep.subr.mxu0 %v468
        %1214 = vmatpush1.msra.mxu0 %v467
        %1215 = vmatprep.subr.mxu0 0.0
        %1216 = vmatpush1.msra.mxu0 0.0
        %1217 = vmatprep.subr.mxu0 0.0
        %1218 = vmatpush1.msra.mxu0 0.0
        %1219 = vmatprep.subr.mxu0 0.0
        %1220 = vmatpush1.msra.mxu0 0.0
        %1221 = vmatprep.subr.mxu0 0.0
        %1222 = vmatpush1.msra.mxu0 0.0
        %1223 = vmatprep.subr.mxu0 0.0
        %1224 = vmatpush1.msra.mxu0 0.0
        %1225 = vmatprep.subr.mxu0 0.0
        %1226 = vmatpush1.msra.mxu0 0.0
        %1227 = vmatprep.subr.mxu0 0.0
        %1228 = vmatpush1.msra.mxu0 0.0
        %1229 = vmatprep.subr.mxu0 0.0
        %1230 = vmatpush1.msra.mxu0 0.0
        %1231 = vmatprep.subr.mxu0 0.0
        %1232 = vmatpush1.msra.mxu0 0.0
        %1233 = vmatprep.subr.mxu0 0.0
        %1234 = vmatpush1.msra.mxu0 0.0
        %1235 = vmatprep.subr.mxu0 0.0
        %1236 = vmatpush1.msra.mxu0 0.0
        %1237 = vmatprep.subr.mxu0 0.0
        %1238 = vmatpush1.msra.mxu0 0.0
        %1239 = vmatprep.subr.mxu0 0.0
        %1240 = vmatpush1.msra.mxu0 0.0
        %1241 = vmatprep.subr.mxu0 0.0
        %1242 = vmatpush1.msra.mxu0 0.0
        %1243 = vmatprep.subr.mxu0 0.0
        %1244 = vmatpush1.msra.mxu0 0.0
        %1245 = vmatprep.subr.mxu0 0.0
        %1246 = vmatpush1.msra.mxu0 0.0
        %1247 = vmatprep.subr.mxu0 0.0
        %1248 = vmatpush1.msra.mxu0 0.0
        %1249 = vmatprep.subr.mxu0 0.0
        %1250 = vmatpush1.msra.mxu0 0.0
        %1251 = vmatprep.subr.mxu0 0.0
        %1252 = vmatpush1.msra.mxu0 0.0
        %1253 = vmatprep.subr.mxu0 0.0
        %1254 = vmatpush1.msra.mxu0 0.0
        %1255 = vmatprep.subr.mxu0 0.0
        %1256 = vmatpush1.msra.mxu0 0.0
        %1257 = vmatprep.subr.mxu0 0.0
        %1258 = vmatpush1.msra.mxu0 0.0
        %1259 = vmatprep.subr.mxu0 0.0
        %1260 = vmatpush1.msra.mxu0 0.0
        %1261 = vmatprep.subr.mxu0 0.0
        %1262 = vmatpush1.msra.mxu0 0.0
        %1263 = vmatprep.mubr.f32.mxu0 0.0
        %1264 = vmatmul.mubr.f32.gmra.mrb[0].mxu0 %v487
        %v1265 = vpop.f32.mrb[0].mxu0
        %v1266 = vadd.f32 %v483, %v1265
        %v1267 = vpop.f32.mrb[0].mxu0
        %v1268 = vadd.f32 %v483, %v1267
        %1269 = vdwg.mxu0
        %1270 = vmatprep.subr.mxu0 %v246
        %1271 = vmatpush1.msra.mxu0 %v245
        %1272 = vmatprep.subr.mxu0 %v278
        %1273 = vmatpush1.msra.mxu0 %v277
        %1274 = vmatprep.subr.mxu0 %v310
        %1275 = vmatpush1.msra.mxu0 %v309
        %1276 = vmatprep.subr.mxu0 %v342
        %1277 = vmatpush1.msra.mxu0 %v341
        %1278 = vmatprep.subr.mxu0 %v374
        %1279 = vmatpush1.msra.mxu0 %v373
        %1280 = vmatprep.subr.mxu0 %v406
        %1281 = vmatpush1.msra.mxu0 %v405
        %1282 = vmatprep.subr.mxu0 %v438
        %1283 = vmatpush1.msra.mxu0 %v437
        %1284 = vmatprep.subr.mxu0 %v470
        %1285 = vmatpush1.msra.mxu0 %v469
        %1286 = vmatprep.subr.mxu0 0.0
        %1287 = vmatpush1.msra.mxu0 0.0
        %1288 = vmatprep.subr.mxu0 0.0
        %1289 = vmatpush1.msra.mxu0 0.0
        %1290 = vmatprep.subr.mxu0 0.0
        %1291 = vmatpush1.msra.mxu0 0.0
        %1292 = vmatprep.subr.mxu0 0.0
        %1293 = vmatpush1.msra.mxu0 0.0
        %1294 = vmatprep.subr.mxu0 0.0
        %1295 = vmatpush1.msra.mxu0 0.0
        %1296 = vmatprep.subr.mxu0 0.0
        %1297 = vmatpush1.msra.mxu0 0.0
        %1298 = vmatprep.subr.mxu0 0.0
        %1299 = vmatpush1.msra.mxu0 0.0
        %1300 = vmatprep.subr.mxu0 0.0
        %1301 = vmatpush1.msra.mxu0 0.0
        %1302 = vmatprep.subr.mxu0 0.0
        %1303 = vmatpush1.msra.mxu0 0.0
        %1304 = vmatprep.subr.mxu0 0.0
        %1305 = vmatpush1.msra.mxu0 0.0
        %1306 = vmatprep.subr.mxu0 0.0
        %1307 = vmatpush1.msra.mxu0 0.0
        %1308 = vmatprep.subr.mxu0 0.0
        %1309 = vmatpush1.msra.mxu0 0.0
        %1310 = vmatprep.subr.mxu0 0.0
        %1311 = vmatpush1.msra.mxu0 0.0
        %1312 = vmatprep.subr.mxu0 0.0
        %1313 = vmatpush1.msra.mxu0 0.0
        %1314 = vmatprep.subr.mxu0 0.0
        %1315 = vmatpush1.msra.mxu0 0.0
        %1316 = vmatprep.subr.mxu0 0.0
        %1317 = vmatpush1.msra.mxu0 0.0
        %1318 = vmatprep.subr.mxu0 0.0
        %1319 = vmatpush1.msra.mxu0 0.0
        %1320 = vmatprep.subr.mxu0 0.0
        %1321 = vmatpush1.msra.mxu0 0.0
        %1322 = vmatprep.subr.mxu0 0.0
        %1323 = vmatpush1.msra.mxu0 0.0
        %1324 = vmatprep.subr.mxu0 0.0
        %1325 = vmatpush1.msra.mxu0 0.0
        %1326 = vmatprep.subr.mxu0 0.0
        %1327 = vmatpush1.msra.mxu0 0.0
        %1328 = vmatprep.subr.mxu0 0.0
        %1329 = vmatpush1.msra.mxu0 0.0
        %1330 = vmatprep.subr.mxu0 0.0
        %1331 = vmatpush1.msra.mxu0 0.0
        %1332 = vmatprep.subr.mxu0 0.0
        %1333 = vmatpush1.msra.mxu0 0.0
        %1334 = vmatprep.mubr.f32.mxu0 0.0
        %1335 = vmatmul.mubr.f32.gmra.mrb[0].mxu0 %v487
        %v1336 = vpop.f32.mrb[0].mxu0
        %v1337 = vadd.f32 %v483, %v1336
        %v1338 = vpop.f32.mrb[0].mxu0
        %v1339 = vadd.f32 %v483, %v1338
        %1340 = vdwg.mxu0
        %1341 = vmatprep.subr.mxu0 %v248
        %1342 = vmatpush1.msra.mxu0 %v247
        %1343 = vmatprep.subr.mxu0 %v280
        %1344 = vmatpush1.msra.mxu0 %v279
        %1345 = vmatprep.subr.mxu0 %v312
        %1346 = vmatpush1.msra.mxu0 %v311
        %1347 = vmatprep.subr.mxu0 %v344
        %1348 = vmatpush1.msra.mxu0 %v343
        %1349 = vmatprep.subr.mxu0 %v376
        %1350 = vmatpush1.msra.mxu0 %v375
        %1351 = vmatprep.subr.mxu0 %v408
        %1352 = vmatpush1.msra.mxu0 %v407
        %1353 = vmatprep.subr.mxu0 %v440
        %1354 = vmatpush1.msra.mxu0 %v439
        %1355 = vmatprep.subr.mxu0 %v472
        %1356 = vmatpush1.msra.mxu0 %v471
        %1357 = vmatprep.subr.mxu0 0.0
        %1358 = vmatpush1.msra.mxu0 0.0
        %1359 = vmatprep.subr.mxu0 0.0
        %1360 = vmatpush1.msra.mxu0 0.0
        %1361 = vmatprep.subr.mxu0 0.0
        %1362 = vmatpush1.msra.mxu0 0.0
        %1363 = vmatprep.subr.mxu0 0.0
        %1364 = vmatpush1.msra.mxu0 0.0
        %1365 = vmatprep.subr.mxu0 0.0
        %1366 = vmatpush1.msra.mxu0 0.0
        %1367 = vmatprep.subr.mxu0 0.0
        %1368 = vmatpush1.msra.mxu0 0.0
        %1369 = vmatprep.subr.mxu0 0.0
        %1370 = vmatpush1.msra.mxu0 0.0
        %1371 = vmatprep.subr.mxu0 0.0
        %1372 = vmatpush1.msra.mxu0 0.0
        %1373 = vmatprep.subr.mxu0 0.0
        %1374 = vmatpush1.msra.mxu0 0.0
        %1375 = vmatprep.subr.mxu0 0.0
        %1376 = vmatpush1.msra.mxu0 0.0
        %1377 = vmatprep.subr.mxu0 0.0
        %1378 = vmatpush1.msra.mxu0 0.0
        %1379 = vmatprep.subr.mxu0 0.0
        %1380 = vmatpush1.msra.mxu0 0.0
        %1381 = vmatprep.subr.mxu0 0.0
        %1382 = vmatpush1.msra.mxu0 0.0
        %1383 = vmatprep.subr.mxu0 0.0
        %1384 = vmatpush1.msra.mxu0 0.0
        %1385 = vmatprep.subr.mxu0 0.0
        %1386 = vmatpush1.msra.mxu0 0.0
        %1387 = vmatprep.subr.mxu0 0.0
        %1388 = vmatpush1.msra.mxu0 0.0
        %1389 = vmatprep.subr.mxu0 0.0
        %1390 = vmatpush1.msra.mxu0 0.0
        %1391 = vmatprep.subr.mxu0 0.0
        %1392 = vmatpush1.msra.mxu0 0.0
        %1393 = vmatprep.subr.mxu0 0.0
        %1394 = vmatpush1.msra.mxu0 0.0
        %1395 = vmatprep.subr.mxu0 0.0
        %1396 = vmatpush1.msra.mxu0 0.0
        %1397 = vmatprep.subr.mxu0 0.0
        %1398 = vmatpush1.msra.mxu0 0.0
        %1399 = vmatprep.subr.mxu0 0.0
        %1400 = vmatpush1.msra.mxu0 0.0
        %1401 = vmatprep.subr.mxu0 0.0
        %1402 = vmatpush1.msra.mxu0 0.0
        %1403 = vmatprep.subr.mxu0 0.0
        %1404 = vmatpush1.msra.mxu0 0.0
        %1405 = vmatprep.mubr.f32.mxu0 0.0
        %1406 = vmatmul.mubr.f32.gmra.mrb[0].mxu0 %v487
        %v1407 = vpop.f32.mrb[0].mxu0
        %v1408 = vadd.f32 %v483, %v1407
        %v1409 = vpop.f32.mrb[0].mxu0
        %v1410 = vadd.f32 %v483, %v1409
        %1411 = vdwg.mxu0
        %1412 = vmatprep.subr.mxu0 %v250
        %1413 = vmatpush1.msra.mxu0 %v249
        %1414 = vmatprep.subr.mxu0 %v282
        %1415 = vmatpush1.msra.mxu0 %v281
        %1416 = vmatprep.subr.mxu0 %v314
        %1417 = vmatpush1.msra.mxu0 %v313
        %1418 = vmatprep.subr.mxu0 %v346
        %1419 = vmatpush1.msra.mxu0 %v345
        %1420 = vmatprep.subr.mxu0 %v378
        %1421 = vmatpush1.msra.mxu0 %v377
        %1422 = vmatprep.subr.mxu0 %v410
        %1423 = vmatpush1.msra.mxu0 %v409
        %1424 = vmatprep.subr.mxu0 %v442
        %1425 = vmatpush1.msra.mxu0 %v441
        %1426 = vmatprep.subr.mxu0 %v474
        %1427 = vmatpush1.msra.mxu0 %v473
        %1428 = vmatprep.subr.mxu0 0.0
        %1429 = vmatpush1.msra.mxu0 0.0
        %1430 = vmatprep.subr.mxu0 0.0
        %1431 = vmatpush1.msra.mxu0 0.0
        %1432 = vmatprep.subr.mxu0 0.0
        %1433 = vmatpush1.msra.mxu0 0.0
        %1434 = vmatprep.subr.mxu0 0.0
        %1435 = vmatpush1.msra.mxu0 0.0
        %1436 = vmatprep.subr.mxu0 0.0
        %1437 = vmatpush1.msra.mxu0 0.0
        %1438 = vmatprep.subr.mxu0 0.0
        %1439 = vmatpush1.msra.mxu0 0.0
        %1440 = vmatprep.subr.mxu0 0.0
        %1441 = vmatpush1.msra.mxu0 0.0
        %1442 = vmatprep.subr.mxu0 0.0
        %1443 = vmatpush1.msra.mxu0 0.0
        %1444 = vmatprep.subr.mxu0 0.0
        %1445 = vmatpush1.msra.mxu0 0.0
        %1446 = vmatprep.subr.mxu0 0.0
        %1447 = vmatpush1.msra.mxu0 0.0
        %1448 = vmatprep.subr.mxu0 0.0
        %1449 = vmatpush1.msra.mxu0 0.0
        %1450 = vmatprep.subr.mxu0 0.0
        %1451 = vmatpush1.msra.mxu0 0.0
        %1452 = vmatprep.subr.mxu0 0.0
        %1453 = vmatpush1.msra.mxu0 0.0
        %1454 = vmatprep.subr.mxu0 0.0
        %1455 = vmatpush1.msra.mxu0 0.0
        %1456 = vmatprep.subr.mxu0 0.0
        %1457 = vmatpush1.msra.mxu0 0.0
        %1458 = vmatprep.subr.mxu0 0.0
        %1459 = vmatpush1.msra.mxu0 0.0
        %1460 = vmatprep.subr.mxu0 0.0
        %1461 = vmatpush1.msra.mxu0 0.0
        %1462 = vmatprep.subr.mxu0 0.0
        %1463 = vmatpush1.msra.mxu0 0.0
        %1464 = vmatprep.subr.mxu0 0.0
        %1465 = vmatpush1.msra.mxu0 0.0
        %1466 = vmatprep.subr.mxu0 0.0
        %1467 = vmatpush1.msra.mxu0 0.0
        %1468 = vmatprep.subr.mxu0 0.0
        %1469 = vmatpush1.msra.mxu0 0.0
        %1470 = vmatprep.subr.mxu0 0.0
        %1471 = vmatpush1.msra.mxu0 0.0
        %1472 = vmatprep.subr.mxu0 0.0
        %1473 = vmatpush1.msra.mxu0 0.0
        %1474 = vmatprep.subr.mxu0 0.0
        %1475 = vmatpush1.msra.mxu0 0.0
        %1476 = vmatprep.mubr.f32.mxu0 0.0
        %1477 = vmatmul.mubr.f32.gmra.mrb[0].mxu0 %v487
        %v1478 = vpop.f32.mrb[0].mxu0
        %v1479 = vadd.f32 %v483, %v1478
        %v1480 = vpop.f32.mrb[0].mxu0
        %v1481 = vadd.f32 %v483, %v1480
        %1482 = vdwg.mxu0
        %1483 = vmatprep.subr.mxu0 %v252
        %1484 = vmatpush1.msra.mxu0 %v251
        %1485 = vmatprep.subr.mxu0 %v284
        %1486 = vmatpush1.msra.mxu0 %v283
        %1487 = vmatprep.subr.mxu0 %v316
        %1488 = vmatpush1.msra.mxu0 %v315
        %1489 = vmatprep.subr.mxu0 %v348
        %1490 = vmatpush1.msra.mxu0 %v347
        %1491 = vmatprep.subr.mxu0 %v380
        %1492 = vmatpush1.msra.mxu0 %v379
        %1493 = vmatprep.subr.mxu0 %v412
        %1494 = vmatpush1.msra.mxu0 %v411
        %1495 = vmatprep.subr.mxu0 %v444
        %1496 = vmatpush1.msra.mxu0 %v443
        %1497 = vmatprep.subr.mxu0 %v476
        %1498 = vmatpush1.msra.mxu0 %v475
        %1499 = vmatprep.subr.mxu0 0.0
        %1500 = vmatpush1.msra.mxu0 0.0
        %1501 = vmatprep.subr.mxu0 0.0
        %1502 = vmatpush1.msra.mxu0 0.0
        %1503 = vmatprep.subr.mxu0 0.0
        %1504 = vmatpush1.msra.mxu0 0.0
        %1505 = vmatprep.subr.mxu0 0.0
        %1506 = vmatpush1.msra.mxu0 0.0
        %1507 = vmatprep.subr.mxu0 0.0
        %1508 = vmatpush1.msra.mxu0 0.0
        %1509 = vmatprep.subr.mxu0 0.0
        %1510 = vmatpush1.msra.mxu0 0.0
        %1511 = vmatprep.subr.mxu0 0.0
        %1512 = vmatpush1.msra.mxu0 0.0
        %1513 = vmatprep.subr.mxu0 0.0
        %1514 = vmatpush1.msra.mxu0 0.0
        %1515 = vmatprep.subr.mxu0 0.0
        %1516 = vmatpush1.msra.mxu0 0.0
        %1517 = vmatprep.subr.mxu0 0.0
        %1518 = vmatpush1.msra.mxu0 0.0
        %1519 = vmatprep.subr.mxu0 0.0
        %1520 = vmatpush1.msra.mxu0 0.0
        %1521 = vmatprep.subr.mxu0 0.0
        %1522 = vmatpush1.msra.mxu0 0.0
        %1523 = vmatprep.subr.mxu0 0.0
        %1524 = vmatpush1.msra.mxu0 0.0
        %1525 = vmatprep.subr.mxu0 0.0
        %1526 = vmatpush1.msra.mxu0 0.0
        %1527 = vmatprep.subr.mxu0 0.0
        %1528 = vmatpush1.msra.mxu0 0.0
        %1529 = vmatprep.subr.mxu0 0.0
        %1530 = vmatpush1.msra.mxu0 0.0
        %1531 = vmatprep.subr.mxu0 0.0
        %1532 = vmatpush1.msra.mxu0 0.0
        %1533 = vmatprep.subr.mxu0 0.0
        %1534 = vmatpush1.msra.mxu0 0.0
        %1535 = vmatprep.subr.mxu0 0.0
        %1536 = vmatpush1.msra.mxu0 0.0
        %1537 = vmatprep.subr.mxu0 0.0
        %1538 = vmatpush1.msra.mxu0 0.0
        %1539 = vmatprep.subr.mxu0 0.0
        %1540 = vmatpush1.msra.mxu0 0.0
        %1541 = vmatprep.subr.mxu0 0.0
        %1542 = vmatpush1.msra.mxu0 0.0
        %1543 = vmatprep.subr.mxu0 0.0
        %1544 = vmatpush1.msra.mxu0 0.0
        %1545 = vmatprep.subr.mxu0 0.0
        %1546 = vmatpush1.msra.mxu0 0.0
        %1547 = vmatprep.mubr.f32.mxu0 0.0
        %1548 = vmatmul.mubr.f32.gmra.mrb[0].mxu0 %v487
        %v1549 = vpop.f32.mrb[0].mxu0
        %v1550 = vadd.f32 %v483, %v1549
        %v1551 = vpop.f32.mrb[0].mxu0
        %v1552 = vadd.f32 %v483, %v1551
        %1553 = vdwg.mxu0
        %1554 = vmatprep.subr.mxu0 %v254
        %1555 = vmatpush1.msra.mxu0 %v253
        %1556 = vmatprep.subr.mxu0 %v286
        %1557 = vmatpush1.msra.mxu0 %v285
        %1558 = vmatprep.subr.mxu0 %v318
        %1559 = vmatpush1.msra.mxu0 %v317
        %1560 = vmatprep.subr.mxu0 %v350
        %1561 = vmatpush1.msra.mxu0 %v349
        %1562 = vmatprep.subr.mxu0 %v382
        %1563 = vmatpush1.msra.mxu0 %v381
        %1564 = vmatprep.subr.mxu0 %v414
        %1565 = vmatpush1.msra.mxu0 %v413
        %1566 = vmatprep.subr.mxu0 %v446
        %1567 = vmatpush1.msra.mxu0 %v445
        %1568 = vmatprep.subr.mxu0 %v478
        %1569 = vmatpush1.msra.mxu0 %v477
        %1570 = vmatprep.subr.mxu0 0.0
        %1571 = vmatpush1.msra.mxu0 0.0
        %1572 = vmatprep.subr.mxu0 0.0
        %1573 = vmatpush1.msra.mxu0 0.0
        %1574 = vmatprep.subr.mxu0 0.0
        %1575 = vmatpush1.msra.mxu0 0.0
        %1576 = vmatprep.subr.mxu0 0.0
        %1577 = vmatpush1.msra.mxu0 0.0
        %1578 = vmatprep.subr.mxu0 0.0
        %1579 = vmatpush1.msra.mxu0 0.0
        %1580 = vmatprep.subr.mxu0 0.0
        %1581 = vmatpush1.msra.mxu0 0.0
        %1582 = vmatprep.subr.mxu0 0.0
        %1583 = vmatpush1.msra.mxu0 0.0
        %1584 = vmatprep.subr.mxu0 0.0
        %1585 = vmatpush1.msra.mxu0 0.0
        %1586 = vmatprep.subr.mxu0 0.0
        %1587 = vmatpush1.msra.mxu0 0.0
        %1588 = vmatprep.subr.mxu0 0.0
        %1589 = vmatpush1.msra.mxu0 0.0
        %1590 = vmatprep.subr.mxu0 0.0
        %1591 = vmatpush1.msra.mxu0 0.0
        %1592 = vmatprep.subr.mxu0 0.0
        %1593 = vmatpush1.msra.mxu0 0.0
        %1594 = vmatprep.subr.mxu0 0.0
        %1595 = vmatpush1.msra.mxu0 0.0
        %1596 = vmatprep.subr.mxu0 0.0
        %1597 = vmatpush1.msra.mxu0 0.0
        %1598 = vmatprep.subr.mxu0 0.0
        %1599 = vmatpush1.msra.mxu0 0.0
        %1600 = vmatprep.subr.mxu0 0.0
        %1601 = vmatpush1.msra.mxu0 0.0
        %1602 = vmatprep.subr.mxu0 0.0
        %1603 = vmatpush1.msra.mxu0 0.0
        %1604 = vmatprep.subr.mxu0 0.0
        %1605 = vmatpush1.msra.mxu0 0.0
        %1606 = vmatprep.subr.mxu0 0.0
        %1607 = vmatpush1.msra.mxu0 0.0
        %1608 = vmatprep.subr.mxu0 0.0
        %1609 = vmatpush1.msra.mxu0 0.0
        %1610 = vmatprep.subr.mxu0 0.0
        %1611 = vmatpush1.msra.mxu0 0.0
        %1612 = vmatprep.subr.mxu0 0.0
        %1613 = vmatpush1.msra.mxu0 0.0
        %1614 = vmatprep.subr.mxu0 0.0
        %1615 = vmatpush1.msra.mxu0 0.0
        %1616 = vmatprep.subr.mxu0 0.0
        %1617 = vmatpush1.msra.mxu0 0.0
        %1618 = vmatprep.mubr.f32.mxu0 0.0
        %1619 = vmatmul.mubr.f32.gmra.mrb[0].mxu0 %v487
        %v1620 = vpop.f32.mrb[0].mxu0
        %v1621 = vadd.f32 %v483, %v1620
        %v1622 = vpop.f32.mrb[0].mxu0
        %v1623 = vadd.f32 %v483, %v1622
        %1624 = vdwg.mxu0
        %v1657 = vcombine.low %v556, %v558
        %v1658 = vcombine.low %v627, %v629
        %v1660 = vunpack.c.l.s4 1983009808
        %v1661 = vunpack.c.0.s8 %v1660
        %v1662 = vlaneseq
        %v1663 = vshrl.u32 %v1662, 7
        %v1664 = vsub.s32 %v1661, %v1663
        %v1665 = vrot.slane %v1657, %v1664
        %v1667 = vunpack.c.l.s4 1983009808
        %v1668 = vunpack.c.0.s8 %v1667
        %v1669 = vlaneseq
        %v1670 = vshrl.u32 %v1669, 7
        %v1671 = vsub.s32 %v1668, %v1670
        %v1672 = vrot.slane %v1658, %v1671
        %v1673 = vcombine.low %v1665, %v1672
        %v1674 = vcombine.low %v698, %v700
        %v1675 = vcombine.low %v769, %v771
        %v1677 = vunpack.c.l.s4 1983009808
        %v1678 = vunpack.c.0.s8 %v1677
        %v1679 = vlaneseq
        %v1680 = vshrl.u32 %v1679, 7
        %v1681 = vsub.s32 %v1678, %v1680
        %v1682 = vrot.slane %v1674, %v1681
        %v1684 = vunpack.c.l.s4 1983009808
        %v1685 = vunpack.c.0.s8 %v1684
        %v1686 = vlaneseq
        %v1687 = vshrl.u32 %v1686, 7
        %v1688 = vsub.s32 %v1685, %v1687
        %v1689 = vrot.slane %v1675, %v1688
        %v1690 = vcombine.low %v1682, %v1689
        %v1691 = vcombine.low %v840, %v842
        %v1692 = vcombine.low %v911, %v913
        %v1694 = vunpack.c.l.s4 1983009808
        %v1695 = vunpack.c.0.s8 %v1694
        %v1696 = vlaneseq
        %v1697 = vshrl.u32 %v1696, 7
        %v1698 = vsub.s32 %v1695, %v1697
        %v1699 = vrot.slane %v1691, %v1698
        %v1701 = vunpack.c.l.s4 1983009808
        %v1702 = vunpack.c.0.s8 %v1701
        %v1703 = vlaneseq
        %v1704 = vshrl.u32 %v1703, 7
        %v1705 = vsub.s32 %v1702, %v1704
        %v1706 = vrot.slane %v1692, %v1705
        %v1707 = vcombine.low %v1699, %v1706
        %v1708 = vcombine.low %v982, %v984
        %v1709 = vcombine.low %v1053, %v1055
        %v1711 = vunpack.c.l.s4 1983009808
        %v1712 = vunpack.c.0.s8 %v1711
        %v1713 = vlaneseq
        %v1714 = vshrl.u32 %v1713, 7
        %v1715 = vsub.s32 %v1712, %v1714
        %v1716 = vrot.slane %v1708, %v1715
        %v1718 = vunpack.c.l.s4 1983009808
        %v1719 = vunpack.c.0.s8 %v1718
        %v1720 = vlaneseq
        %v1721 = vshrl.u32 %v1720, 7
        %v1722 = vsub.s32 %v1719, %v1721
        %v1723 = vrot.slane %v1709, %v1722
        %v1724 = vcombine.low %v1716, %v1723
        %v1725 = vcombine.low %v1124, %v1126
        %v1726 = vcombine.low %v1195, %v1197
        %v1728 = vunpack.c.l.s4 1983009808
        %v1729 = vunpack.c.0.s8 %v1728
        %v1730 = vlaneseq
        %v1731 = vshrl.u32 %v1730, 7
        %v1732 = vsub.s32 %v1729, %v1731
        %v1733 = vrot.slane %v1725, %v1732
        %v1735 = vunpack.c.l.s4 1983009808
        %v1736 = vunpack.c.0.s8 %v1735
        %v1737 = vlaneseq
        %v1738 = vshrl.u32 %v1737, 7
        %v1739 = vsub.s32 %v1736, %v1738
        %v1740 = vrot.slane %v1726, %v1739
        %v1741 = vcombine.low %v1733, %v1740
        %v1742 = vcombine.low %v1266, %v1268
        %v1743 = vcombine.low %v1337, %v1339
        %v1745 = vunpack.c.l.s4 1983009808
        %v1746 = vunpack.c.0.s8 %v1745
        %v1747 = vlaneseq
        %v1748 = vshrl.u32 %v1747, 7
        %v1749 = vsub.s32 %v1746, %v1748
        %v1750 = vrot.slane %v1742, %v1749
        %v1752 = vunpack.c.l.s4 1983009808
        %v1753 = vunpack.c.0.s8 %v1752
        %v1754 = vlaneseq
        %v1755 = vshrl.u32 %v1754, 7
        %v1756 = vsub.s32 %v1753, %v1755
        %v1757 = vrot.slane %v1743, %v1756
        %v1758 = vcombine.low %v1750, %v1757
        %v1759 = vcombine.low %v1408, %v1410
        %v1760 = vcombine.low %v1479, %v1481
        %v1762 = vunpack.c.l.s4 1983009808
        %v1763 = vunpack.c.0.s8 %v1762
        %v1764 = vlaneseq
        %v1765 = vshrl.u32 %v1764, 7
        %v1766 = vsub.s32 %v1763, %v1765
        %v1767 = vrot.slane %v1759, %v1766
        %v1769 = vunpack.c.l.s4 1983009808
        %v1770 = vunpack.c.0.s8 %v1769
        %v1771 = vlaneseq
        %v1772 = vshrl.u32 %v1771, 7
        %v1773 = vsub.s32 %v1770, %v1772
        %v1774 = vrot.slane %v1760, %v1773
        %v1775 = vcombine.low %v1767, %v1774
        %v1776 = vcombine.low %v1550, %v1552
        %v1777 = vcombine.low %v1621, %v1623
        %v1779 = vunpack.c.l.s4 1983009808
        %v1780 = vunpack.c.0.s8 %v1779
        %v1781 = vlaneseq
        %v1782 = vshrl.u32 %v1781, 7
        %v1783 = vsub.s32 %v1780, %v1782
        %v1784 = vrot.slane %v1776, %v1783
        %v1786 = vunpack.c.l.s4 1983009808
        %v1787 = vunpack.c.0.s8 %v1786
        %v1788 = vlaneseq
        %v1789 = vshrl.u32 %v1788, 7
        %v1790 = vsub.s32 %v1787, %v1789
        %v1791 = vrot.slane %v1777, %v1790
        %v1792 = vcombine.low %v1784, %v1791
        %1801 = vst [vmem:[%s219] sm:$0xff] %v1673
        %1802 = vst [vmem:[%s219 + $0x8] sm:$0xff] %v1690
        %1803 = vst [vmem:[%s219 + $0x10] sm:$0xff] %v1707
        %1804 = vst [vmem:[%s219 + $0x18] sm:$0xff] %v1724
        %1805 = vst [vmem:[%s219 + $0x20] sm:$0xff] %v1741
        %1806 = vst [vmem:[%s219 + $0x28] sm:$0xff] %v1758
        %1807 = vst [vmem:[%s219 + $0x30] sm:$0xff] %v1775
        %1808 = vst [vmem:[%s219 + $0x38] sm:$0xff] %v1792
        %s1809 = sand.u32 %s113, 1
        %s1810 = scalar_lea.sflag [#allocation4], %s1809
        %s1811 = sand.u32 %s113, 1
        %s1812 = smul.addr %s1811, 64
        %s1813 = scalar_lea.vmem [#allocation7], %s1812
        // Predicated region
        $region41: #{tpu_custom_call.1} parent=31 // pred_check
          %p1814 = pneg %p123
        $region42: #{tpu_custom_call.1} parent=31 // pred_check_branch
          %1816 = sbr.rel (%p1814) target = $region44
        $region43: #{tpu_custom_call.1} parent=31 // pred_region
          %s1817 = smul.u32 32, %s26
          %s1819 = ssub.s32 1024, 1024
          %1820 = vsyncadd %s1810, %s1819
          %s1821 = smul.addr %s25, 32
          %s1822 = sadd.s32 %s1817, %s1821
          %s1823 = smul.addr %s1822, 32
          %s1824 = scalar_lea.hbm %s3, %s1823
          %s1826 = sshll.u32 %s1813, 4
          %s1827 = int_to_ptr.vmem [resolvable:$true] %s1826
          %1829 = dma.vmem_to_hbm [thread:$0]  %s1827, 1024, %s1824, %s1810
        $region44: #{tpu_custom_call.1} parent=31 // pred_fallthru
          _
      $region32: #{tpu_custom_call.1} parent=5 // pred_fallthru
        _
      %p1830 = scmp.le.s32.totalorder 2, %s16
      // Predicated region
      $region45: #{tpu_custom_call.1} parent=5 // pred_check
        %p1831 = pneg %p1830
      $region46: #{tpu_custom_call.1} parent=5 // pred_check_branch
        %1833 = sbr.rel (%p1831) target = $region48
      $region47: #{tpu_custom_call.1} parent=5 // pred_region
        %s1834 = ssub.s32 %s16, 2
        // Predicated region
        $region49: #{tpu_custom_call.1} parent=47 // pred_check
          %p1835 = pneg %p129
        $region50: #{tpu_custom_call.1} parent=47 // pred_check_branch
          %1837 = sbr.rel (%p1835) target = $region52
        $region51: #{tpu_custom_call.1} parent=47 // pred_region
          %s1838 = sand.u32 %s114, 1
          %s1839 = scalar_lea.sflag [#allocation4], %s1838
          %s1840 = sand.u32 %s114, 1
          %s1841 = smul.addr %s1840, 64
          %s1842 = scalar_lea.vmem [#allocation7], %s1841
          %1843 = dma.done %s1839, 1024
        $region52: #{tpu_custom_call.1} parent=47 // pred_fallthru
          _
      $region48: #{tpu_custom_call.1} parent=5 // pred_fallthru
        _
    $region6: #{tpu_custom_call.1} parent=1 // loop_footer
      %s20 = sadd.s32 1, %s16
    $region7: #{tpu_custom_call.1} parent=1 // loop_footer_branch
      %15 = sbr.rel target = $region3
    $region8: #{tpu_custom_call.1} parent=1 // loop_exit
      _
    %1844 = vsyncpa [#allocation3], 1
    %s1845 = scalar_lea.sflag [#allocation3], 1
    %1846 = vsyncpa %s1845, 1
    %1847 = vsyncpa [#allocation6], 1
    %s1848 = scalar_lea.sflag [#allocation6], 1
    %1849 = vsyncpa %s1848, 1
    %1850 = vsyncpa [#allocation4], 1
    %s1851 = scalar_lea.sflag [#allocation4], 1
    %1852 = vsyncpa %s1851, 1

</llo_original>
